<compile_context>
chip_gen: v7x
topology: tpu7x:2x2x1
jax: 0.10.0
libtpu: 0.0.40
codegen_flags: <defaults>
</compile_context>

<pallas_src>
import functools

import jax
import jax.numpy as jnp
from jax.experimental import pallas as pl
from jax.experimental.pallas import tpu as pltpu

GEM_EPS = 1e-6
BN_EPS = 1e-5


def _round_up(x, m):
    return ((x + m - 1) // m) * m


# ---------------------------------------------------------------------------
# Pallas kernels
# ---------------------------------------------------------------------------

def _conv_matmul_kernel(x_ref, w_ref, b_ref, o_ref, *, relu):
    # x: (TILE_M, K) bf16 patches, w: (K, N) bf16, b: (1, N) f32 -> o: (TILE_M, N) f32
    y = jnp.dot(x_ref[...], w_ref[...], preferred_element_type=jnp.float32)
    y = y + b_ref[...]
    if relu:
        y = jnp.maximum(y, 0.0)
    o_ref[...] = y  # single (fused) writeback; N < 128 so keep it to one store


def _gem_head_kernel(p_ref, f0_ref, f1_ref, f2_ref,
                     w0_ref, w1_ref, w2_ref, b_ref, o_ref):
    # One batch element per grid step.
    #   f_i: (1, HW_i, C_i) f32 feature map (NHWC flattened; C on lanes)
    #   p_ref: SMEM (3,) f32 GeM exponents
    #   w_i: (C_i, num_classes) f32 BN-folded head weight chunk
    #   b:   (1, num_classes) f32 BN-folded head bias
    # GeM: (mean_hw(clamp(x, eps)^p))^(1/p); Dropout(0.2) is eval-mode identity.
    acc = b_ref[...]                                            # (1, num_classes)
    for i, (f_ref, w_ref) in enumerate(
            ((f0_ref, w0_ref), (f1_ref, w1_ref), (f2_ref, w2_ref))):
        p = p_ref[i]                                            # scalar from SMEM
        x = jnp.maximum(f_ref[0], GEM_EPS)                      # (HW, C), x > 0
        xp = jnp.exp(jnp.log(x) * p)                            # x^p
        m = jnp.mean(xp, axis=0, keepdims=True)                 # (1, C), true-HW mean
        pooled = jnp.exp(jnp.log(m) * (1.0 / p))                # m^(1/p)
        acc = acc + jnp.dot(pooled, w_ref[...],
                            preferred_element_type=jnp.float32)
    o_ref[0] = acc


# ---------------------------------------------------------------------------
# Pallas call wrappers
# ---------------------------------------------------------------------------

def _conv_matmul(patches_bf16, w_bf16, b_f32, relu):
    """Tiled (over M) matmul + bias + ReLU. patches: (M, K) bf16, w: (K, N) bf16."""
    M, K = patches_bf16.shape
    N = w_bf16.shape[1]
    tile_m = min(512, _round_up(M, 8))          # cap keeps v7x (64 MiB VMEM) happy
    Mp = _round_up(M, tile_m)
    if Mp != M:
        patches_bf16 = jnp.pad(patches_bf16, ((0, Mp - M), (0, 0)))

    cost = pl.CostEstimate(
        flops=2 * Mp * K * N,
        transcendentals=0,
        bytes_accessed=Mp * K * 2 + K * N * 2 + N * 4 + Mp * N * 4,
    )
    out = pl.pallas_call(
        functools.partial(_conv_matmul_kernel, relu=relu),
        out_shape=jax.ShapeDtypeStruct((Mp, N), jnp.float32),
        grid=(Mp // tile_m,),
        in_specs=[
            pl.BlockSpec((tile_m, K), lambda i: (i, 0)),
            pl.BlockSpec((K, N), lambda i: (0, 0)),
            pl.BlockSpec((1, N), lambda i: (0, 0)),
        ],
        out_specs=pl.BlockSpec((tile_m, N), lambda i: (i, 0)),
        compiler_params=pltpu.CompilerParams(
            dimension_semantics=("parallel",),
            vmem_limit_bytes=32 * 1024 * 1024,
        ),
        cost_estimate=cost,
    )(patches_bf16, w_bf16, b_f32.reshape(1, N))
    return out[:M] if Mp != M else out


def _gem_head(feats_nhwc, gem_p, w_chunks, b_fold):
    """Fused 3x GeM pool + BN-folded Linear head in one pallas_call (grid over B)."""
    B = feats_nhwc[0].shape[0]
    num_classes = int(b_fold.shape[-1])
    # (B, Ho, Wo, C) -> (B, Ho*Wo, C): free row-major view, no NCHW transpose.
    flat = [f.reshape(f.shape[0], f.shape[1] * f.shape[2], f.shape[3])
            for f in feats_nhwc]

    in_specs = [pl.BlockSpec(memory_space=pltpu.MemorySpace.SMEM)]   # gem_p scalars
    for f in flat:
        hw, c = int(f.shape[1]), int(f.shape[2])
        in_specs.append(pl.BlockSpec((1, hw, c), lambda bi: (bi, 0, 0)))
    for wch in w_chunks:
        cw = int(wch.shape[0])
        in_specs.append(pl.BlockSpec((cw, num_classes), lambda bi: (0, 0)))
    in_specs.append(pl.BlockSpec((1, num_classes), lambda bi: (0, 0)))

    out = pl.pallas_call(
        _gem_head_kernel,
        out_shape=jax.ShapeDtypeStruct((B, 1, num_classes), jnp.float32),
        grid=(B,),
        in_specs=in_specs,
        out_specs=pl.BlockSpec((1, 1, num_classes), lambda bi: (bi, 0, 0)),
        compiler_params=pltpu.CompilerParams(dimension_semantics=("parallel",)),
    )(gem_p, *flat, *w_chunks, b_fold.reshape(1, num_classes))
    return out.reshape(B, num_classes)


# ---------------------------------------------------------------------------
# Glue (im2col, parameter setup, BN folding, forward)
# ---------------------------------------------------------------------------

def _extract_patches(x_nhwc, ksize=3, stride=2, pad=1):
    """im2col: (B,H,W,C) -> ((B*Ho*Wo, k*k*C), Ho, Wo), column order (kh, kw, cin)."""
    B, H, W, C = x_nhwc.shape
    xp = jnp.pad(x_nhwc, ((0, 0), (pad, pad), (pad, pad), (0, 0)))
    Ho = (H + 2 * pad - ksize) // stride + 1
    Wo = (W + 2 * pad - ksize) // stride + 1
    cols = []
    for dh in range(ksize):
        for dw in range(ksize):
            cols.append(xp[:, dh:dh + stride * Ho:stride, dw:dw + stride * Wo:stride, :])
    patches = jnp.concatenate(cols, axis=-1)                 # (B, Ho, Wo, k*k*C)
    return patches.reshape(B * Ho * Wo, ksize * ksize * C), Ho, Wo


def _conv3x3_s2_relu(x_nhwc, w, b):
    """3x3 / stride-2 / pad-1 conv as a grid-tiled bf16 Pallas matmul over patches."""
    B = x_nhwc.shape[0]
    patches, Ho, Wo = _extract_patches(x_nhwc)
    y = _conv_matmul(patches.astype(jnp.bfloat16), w.astype(jnp.bfloat16), b, relu=True)
    return y.reshape(B, Ho, Wo, w.shape[1])                  # stays NHWC


def init_params(key, in_chans=3, feature_dims=(8, 16, 32), num_classes=7):
    ks = jax.random.split(key, 8)
    params = {}
    cins = (in_chans,) + tuple(feature_dims[:-1])
    for i, (cin, cout) in enumerate(zip(cins, feature_dims)):
        k = 3 * 3 * cin
        params[f"conv{i}_w"] = (jax.random.normal(ks[2 * i], (k, cout), jnp.float32)
                                * (2.0 / k) ** 0.5)
        params[f"conv{i}_b"] = jnp.zeros((cout,), jnp.float32)
    mid = int(sum(feature_dims))
    params["gem_p"] = jnp.full((len(feature_dims),), 3.0, jnp.float32)   # GeM p init
    params["bn_gamma"] = jnp.ones((mid,), jnp.float32)
    params["bn_beta"] = jnp.zeros((mid,), jnp.float32)
    params["bn_mean"] = jnp.zeros((mid,), jnp.float32)
    params["bn_var"] = jnp.ones((mid,), jnp.float32)
    params["head_w"] = (jax.random.normal(ks[6], (mid, num_classes), jnp.float32)
                        * (1.0 / mid) ** 0.5)
    params["head_b"] = jax.random.normal(ks[7], (num_classes,), jnp.float32) * 0.01
    return params


def _fold_bn_into_head(params, feature_dims):
    """Eval-mode BN folded into the Linear head: y = bn(h) @ W + b = h @ W' + b'."""
    scale = params["bn_gamma"] * jax.lax.rsqrt(params["bn_var"] + BN_EPS)
    shift = params["bn_beta"] - params["bn_mean"] * scale
    w_fold = params["head_w"] * scale[:, None]
    b_fold = params["head_b"] + shift @ params["head_w"]
    chunks, off = [], 0
    for c in feature_dims:
        chunks.append(w_fold[off:off + c])
        off += c
    return chunks, b_fold


def cnn_forward(params, x_nchw, feature_dims=(8, 16, 32)):
    """Forward pass matching CNN.forward (eval mode); x in NCHW like PyTorch."""
    x = jnp.transpose(x_nchw, (0, 2, 3, 1)).astype(jnp.float32)   # NCHW -> NHWC once
    feats = []
    h = x
    for i in range(len(feature_dims)):
        h = _conv3x3_s2_relu(h, params[f"conv{i}_w"], params[f"conv{i}_b"])
        feats.append(h)                                           # keep NHWC, no transpose

    w_chunks, b_fold = _fold_bn_into_head(params, feature_dims)
    # Dropout(0.2) in eval mode is identity.
    return _gem_head(feats, params["gem_p"], w_chunks, b_fold)


if __name__ == "__main__":
    key = jax.random.PRNGKey(0)
    k_param, k_x = jax.random.split(key)

    B, C_in, H, W = 2, 3, 16, 16
    num_classes = 7
    feature_dims = (8, 16, 32)
    params = init_params(k_param, in_chans=C_in, feature_dims=feature_dims,
                         num_classes=num_classes)

    x = jax.random.normal(k_x, (B, C_in, H, W), jnp.float32)

    fwd = jax.jit(functools.partial(cnn_forward, feature_dims=feature_dims))
    y = fwd(params, x)
    jax.block_until_ready(y)
    assert y.shape == (B, num_classes), y.shape
    assert bool(jnp.all(jnp.isfinite(y)))
    print("KERNEL_OK")
</pallas_src>

<mosaic_0001>
module attributes {stable_mosaic.version = 11 : i64} {
  func.func @_conv_matmul_kernel(%arg0: i32, %arg1: memref<128x27xbf16, #tpu.memory_space<vmem>>, %arg2: memref<27x8xbf16, #tpu.memory_space<vmem>>, %arg3: memref<1x8xf32, #tpu.memory_space<vmem>>, %arg4: memref<128x8xf32, #tpu.memory_space<vmem>>) attributes {dimension_semantics = [#tpu.dimension_semantics<parallel>], iteration_bounds = array<i64: 1>, scalar_prefetch = 0 : i64, scratch_operands = 0 : i64, tpu.core_type = #tpu.core_type<tc>, window_params = [{transform_indices = @transform_0, window_bounds = array<i64: 128, 27>}, {pipeline_mode = #tpu.pipeline_mode<synchronous>, transform_indices = @transform_1, window_bounds = array<i64: 27, 8>}, {pipeline_mode = #tpu.pipeline_mode<synchronous>, transform_indices = @transform_2, window_bounds = array<i64: 1, 8>}, {transform_indices = @transform_3, window_bounds = array<i64: 128, 8>}]} {
    %c0 = arith.constant 0 : index
    %c0_0 = arith.constant 0 : index
    %0 = vector.load %arg1[%c0, %c0_0] : memref<128x27xbf16, #tpu.memory_space<vmem>>, vector<128x27xbf16>
    %c0_1 = arith.constant 0 : index
    %c0_2 = arith.constant 0 : index
    %1 = vector.load %arg2[%c0_1, %c0_2] : memref<27x8xbf16, #tpu.memory_space<vmem>>, vector<27x8xbf16>
    %cst = arith.constant dense<0.000000e+00> : vector<128x8xf32>
    %2 = tpu.matmul %0, %1, %cst {dimension_numbers = #tpu.dot_dimension_numbers<[1], [0], [0], [1], [0, 0, 1, 1], [], []>} : vector<128x27xbf16>, vector<27x8xbf16>, vector<128x8xf32> -> vector<128x8xf32>
    %c0_3 = arith.constant 0 : index
    %c0_4 = arith.constant 0 : index
    %3 = vector.load %arg3[%c0_3, %c0_4] : memref<1x8xf32, #tpu.memory_space<vmem>>, vector<1x8xf32>
    %4 = vector.broadcast %3 : vector<1x8xf32> to vector<128x8xf32>
    %5 = arith.addf %2, %4 : vector<128x8xf32>
    %cst_5 = arith.constant 0.000000e+00 : f32
    %6 = vector.broadcast %cst_5 : f32 to vector<128x8xf32>
    %7 = arith.maximumf %5, %6 : vector<128x8xf32>
    %c0_6 = arith.constant 0 : index
    %c0_7 = arith.constant 0 : index
    %8 = vector.load %arg4[%c0_6, %c0_7] : memref<128x8xf32, #tpu.memory_space<vmem>>, vector<128x8xf32>
    tpu.vector_store %arg4[%c0_6, %c0_7], %7 {strides = array<i32>} : memref<128x8xf32, #tpu.memory_space<vmem>>, vector<128x8xf32>,
    return
  }
  func.func @transform_0(%arg0: i32) -> (i32, i32) {
    %c0_i32 = arith.constant 0 : i32
    %c0_i32_0 = arith.constant 0 : i32
    return %arg0, %c0_i32 : i32, i32
  }
  func.func @transform_1(%arg0: i32) -> (i32, i32) {
    %c0_i32 = arith.constant 0 : i32
    %c0_i32_0 = arith.constant 0 : i32
    %c0_i32_1 = arith.constant 0 : i32
    return %c0_i32, %c0_i32_0 : i32, i32
  }
  func.func @transform_2(%arg0: i32) -> (i32, i32) {
    %c0_i32 = arith.constant 0 : i32
    %c0_i32_0 = arith.constant 0 : i32
    %c0_i32_1 = arith.constant 0 : i32
    return %c0_i32, %c0_i32_0 : i32, i32
  }
  func.func @transform_3(%arg0: i32) -> (i32, i32) {
    %c0_i32 = arith.constant 0 : i32
    %c0_i32_0 = arith.constant 0 : i32
    return %arg0, %c0_i32 : i32, i32
  }
}

module attributes {stable_mosaic.version = 11 : i64} {
  func.func @_conv_matmul_kernel(%arg0: i32, %arg1: memref<32x72xbf16, #tpu.memory_space<vmem>>, %arg2: memref<72x16xbf16, #tpu.memory_space<vmem>>, %arg3: memref<1x16xf32, #tpu.memory_space<vmem>>, %arg4: memref<32x16xf32, #tpu.memory_space<vmem>>) attributes {dimension_semantics = [#tpu.dimension_semantics<parallel>], iteration_bounds = array<i64: 1>, scalar_prefetch = 0 : i64, scratch_operands = 0 : i64, tpu.core_type = #tpu.core_type<tc>, window_params = [{transform_indices = @transform_0, window_bounds = array<i64: 32, 72>}, {pipeline_mode = #tpu.pipeline_mode<synchronous>, transform_indices = @transform_1, window_bounds = array<i64: 72, 16>}, {pipeline_mode = #tpu.pipeline_mode<synchronous>, transform_indices = @transform_2, window_bounds = array<i64: 1, 16>}, {transform_indices = @transform_3, window_bounds = array<i64: 32, 16>}]} {
    %c0 = arith.constant 0 : index
    %c0_0 = arith.constant 0 : index
    %0 = vector.load %arg1[%c0, %c0_0] : memref<32x72xbf16, #tpu.memory_space<vmem>>, vector<32x72xbf16>
    %c0_1 = arith.constant 0 : index
    %c0_2 = arith.constant 0 : index
    %1 = vector.load %arg2[%c0_1, %c0_2] : memref<72x16xbf16, #tpu.memory_space<vmem>>, vector<72x16xbf16>
    %cst = arith.constant dense<0.000000e+00> : vector<32x16xf32>
    %2 = tpu.matmul %0, %1, %cst {dimension_numbers = #tpu.dot_dimension_numbers<[1], [0], [0], [1], [0, 0, 1, 1], [], []>} : vector<32x72xbf16>, vector<72x16xbf16>, vector<32x16xf32> -> vector<32x16xf32>
    %c0_3 = arith.constant 0 : index
    %c0_4 = arith.constant 0 : index
    %3 = vector.load %arg3[%c0_3, %c0_4] : memref<1x16xf32, #tpu.memory_space<vmem>>, vector<1x16xf32>
    %4 = vector.broadcast %3 : vector<1x16xf32> to vector<32x16xf32>
    %5 = arith.addf %2, %4 : vector<32x16xf32>
    %cst_5 = arith.constant 0.000000e+00 : f32
    %6 = vector.broadcast %cst_5 : f32 to vector<32x16xf32>
    %7 = arith.maximumf %5, %6 : vector<32x16xf32>
    %c0_6 = arith.constant 0 : index
    %c0_7 = arith.constant 0 : index
    %8 = vector.load %arg4[%c0_6, %c0_7] : memref<32x16xf32, #tpu.memory_space<vmem>>, vector<32x16xf32>
    tpu.vector_store %arg4[%c0_6, %c0_7], %7 {strides = array<i32>} : memref<32x16xf32, #tpu.memory_space<vmem>>, vector<32x16xf32>,
    return
  }
  func.func @transform_0(%arg0: i32) -> (i32, i32) {
    %c0_i32 = arith.constant 0 : i32
    %c0_i32_0 = arith.constant 0 : i32
    return %arg0, %c0_i32 : i32, i32
  }
  func.func @transform_1(%arg0: i32) -> (i32, i32) {
    %c0_i32 = arith.constant 0 : i32
    %c0_i32_0 = arith.constant 0 : i32
    %c0_i32_1 = arith.constant 0 : i32
    return %c0_i32, %c0_i32_0 : i32, i32
  }
  func.func @transform_2(%arg0: i32) -> (i32, i32) {
    %c0_i32 = arith.constant 0 : i32
    %c0_i32_0 = arith.constant 0 : i32
    %c0_i32_1 = arith.constant 0 : i32
    return %c0_i32, %c0_i32_0 : i32, i32
  }
  func.func @transform_3(%arg0: i32) -> (i32, i32) {
    %c0_i32 = arith.constant 0 : i32
    %c0_i32_0 = arith.constant 0 : i32
    return %arg0, %c0_i32 : i32, i32
  }
}

module attributes {stable_mosaic.version = 11 : i64} {
  func.func @_conv_matmul_kernel(%arg0: i32, %arg1: memref<8x144xbf16, #tpu.memory_space<vmem>>, %arg2: memref<144x32xbf16, #tpu.memory_space<vmem>>, %arg3: memref<1x32xf32, #tpu.memory_space<vmem>>, %arg4: memref<8x32xf32, #tpu.memory_space<vmem>>) attributes {dimension_semantics = [#tpu.dimension_semantics<parallel>], iteration_bounds = array<i64: 1>, scalar_prefetch = 0 : i64, scratch_operands = 0 : i64, tpu.core_type = #tpu.core_type<tc>, window_params = [{transform_indices = @transform_0, window_bounds = array<i64: 8, 144>}, {pipeline_mode = #tpu.pipeline_mode<synchronous>, transform_indices = @transform_1, window_bounds = array<i64: 144, 32>}, {pipeline_mode = #tpu.pipeline_mode<synchronous>, transform_indices = @transform_2, window_bounds = array<i64: 1, 32>}, {transform_indices = @transform_3, window_bounds = array<i64: 8, 32>}]} {
    %c0 = arith.constant 0 : index
    %c0_0 = arith.constant 0 : index
    %0 = vector.load %arg1[%c0, %c0_0] : memref<8x144xbf16, #tpu.memory_space<vmem>>, vector<8x144xbf16>
    %c0_1 = arith.constant 0 : index
    %c0_2 = arith.constant 0 : index
    %1 = vector.load %arg2[%c0_1, %c0_2] : memref<144x32xbf16, #tpu.memory_space<vmem>>, vector<144x32xbf16>
    %cst = arith.constant dense<0.000000e+00> : vector<8x32xf32>
    %2 = tpu.matmul %0, %1, %cst {dimension_numbers = #tpu.dot_dimension_numbers<[1], [0], [0], [1], [0, 0, 1, 1], [], []>} : vector<8x144xbf16>, vector<144x32xbf16>, vector<8x32xf32> -> vector<8x32xf32>
    %c0_3 = arith.constant 0 : index
    %c0_4 = arith.constant 0 : index
    %3 = vector.load %arg3[%c0_3, %c0_4] : memref<1x32xf32, #tpu.memory_space<vmem>>, vector<1x32xf32>
    %4 = vector.broadcast %3 : vector<1x32xf32> to vector<8x32xf32>
    %5 = arith.addf %2, %4 : vector<8x32xf32>
    %cst_5 = arith.constant 0.000000e+00 : f32
    %6 = vector.broadcast %cst_5 : f32 to vector<8x32xf32>
    %7 = arith.maximumf %5, %6 : vector<8x32xf32>
    %c0_6 = arith.constant 0 : index
    %c0_7 = arith.constant 0 : index
    %8 = vector.load %arg4[%c0_6, %c0_7] : memref<8x32xf32, #tpu.memory_space<vmem>>, vector<8x32xf32>
    tpu.vector_store %arg4[%c0_6, %c0_7], %7 {strides = array<i32>} : memref<8x32xf32, #tpu.memory_space<vmem>>, vector<8x32xf32>,
    return
  }
  func.func @transform_0(%arg0: i32) -> (i32, i32) {
    %c0_i32 = arith.constant 0 : i32
    %c0_i32_0 = arith.constant 0 : i32
    return %arg0, %c0_i32 : i32, i32
  }
  func.func @transform_1(%arg0: i32) -> (i32, i32) {
    %c0_i32 = arith.constant 0 : i32
    %c0_i32_0 = arith.constant 0 : i32
    %c0_i32_1 = arith.constant 0 : i32
    return %c0_i32, %c0_i32_0 : i32, i32
  }
  func.func @transform_2(%arg0: i32) -> (i32, i32) {
    %c0_i32 = arith.constant 0 : i32
    %c0_i32_0 = arith.constant 0 : i32
    %c0_i32_1 = arith.constant 0 : i32
    return %c0_i32, %c0_i32_0 : i32, i32
  }
  func.func @transform_3(%arg0: i32) -> (i32, i32) {
    %c0_i32 = arith.constant 0 : i32
    %c0_i32_0 = arith.constant 0 : i32
    return %arg0, %c0_i32 : i32, i32
  }
}

module attributes {stable_mosaic.version = 11 : i64} {
  func.func @_gem_head_kernel(%arg0: i32, %arg1: memref<3xf32, #tpu.memory_space<smem>>, %arg2: memref<1x64x8xf32, #tpu.memory_space<vmem>>, %arg3: memref<1x16x16xf32, #tpu.memory_space<vmem>>, %arg4: memref<1x4x32xf32, #tpu.memory_space<vmem>>, %arg5: memref<8x7xf32, #tpu.memory_space<vmem>>, %arg6: memref<16x7xf32, #tpu.memory_space<vmem>>, %arg7: memref<32x7xf32, #tpu.memory_space<vmem>>, %arg8: memref<1x7xf32, #tpu.memory_space<vmem>>, %arg9: memref<1x1x7xf32, #tpu.memory_space<vmem>>) attributes {dimension_semantics = [#tpu.dimension_semantics<parallel>], iteration_bounds = array<i64: 2>, scalar_prefetch = 0 : i64, scratch_operands = 0 : i64, tpu.core_type = #tpu.core_type<tc>, window_params = [{transform_indices = @transform_0, window_bounds = array<i64: 3>}, {transform_indices = @transform_1, window_bounds = array<i64: 1, 64, 8>}, {transform_indices = @transform_2, window_bounds = array<i64: 1, 16, 16>}, {transform_indices = @transform_3, window_bounds = array<i64: 1, 4, 32>}, {pipeline_mode = #tpu.pipeline_mode<synchronous>, transform_indices = @transform_4, window_bounds = array<i64: 8, 7>}, {pipeline_mode = #tpu.pipeline_mode<synchronous>, transform_indices = @transform_5, window_bounds = array<i64: 16, 7>}, {pipeline_mode = #tpu.pipeline_mode<synchronous>, transform_indices = @transform_6, window_bounds = array<i64: 32, 7>}, {pipeline_mode = #tpu.pipeline_mode<synchronous>, transform_indices = @transform_7, window_bounds = array<i64: 1, 7>}, {transform_indices = @transform_8, window_bounds = array<i64: 1, 1, 7>}]} {
    %c0 = arith.constant 0 : index
    %c0_0 = arith.constant 0 : index
    %0 = vector.load %arg8[%c0, %c0_0] : memref<1x7xf32, #tpu.memory_space<vmem>>, vector<1x7xf32>
    %c0_1 = arith.constant 0 : index
    %1 = memref.load %arg1[%c0_1] : memref<3xf32, #tpu.memory_space<smem>>
    %c0_2 = arith.constant 0 : index
    %c0_3 = arith.constant 0 : index
    %c0_4 = arith.constant 0 : index
    %2 = vector.load %arg2[%c0_2, %c0_3, %c0_4] : memref<1x64x8xf32, #tpu.memory_space<vmem>>, vector<1x64x8xf32>
    %3 = vector.shape_cast %2 : vector<1x64x8xf32> to vector<64x8xf32>
    %cst = arith.constant 9.99999997E-7 : f32
    %4 = vector.broadcast %cst : f32 to vector<64x8xf32>
    %5 = arith.maximumf %3, %4 : vector<64x8xf32>
    %6 = math.log %5 : vector<64x8xf32>
    %7 = vector.broadcast %1 : f32 to vector<64x8xf32>
    %8 = arith.mulf %6, %7 : vector<64x8xf32>
    %9 = math.exp %8 : vector<64x8xf32>
    %cst_5 = arith.constant dense<0.000000e+00> : vector<8xf32>
    %10 = vector.multi_reduction <add>, %9, %cst_5 [0] : vector<64x8xf32> to vector<8xf32>
    %11 = vector.shape_cast %10 : vector<8xf32> to vector<1x8xf32>
    %cst_6 = arith.constant 6.400000e+01 : f32
    %12 = vector.broadcast %cst_6 : f32 to vector<1x8xf32>
    %13 = arith.divf %11, %12 : vector<1x8xf32>
    %14 = math.log %13 : vector<1x8xf32>
    %cst_7 = arith.constant 1.000000e+00 : f32
    %15 = arith.divf %cst_7, %1 : f32
    %16 = vector.broadcast %15 : f32 to vector<1x8xf32>
    %17 = arith.mulf %14, %16 : vector<1x8xf32>
    %18 = math.exp %17 : vector<1x8xf32>
    %c0_8 = arith.constant 0 : index
    %c0_9 = arith.constant 0 : index
    %19 = vector.load %arg5[%c0_8, %c0_9] : memref<8x7xf32, #tpu.memory_space<vmem>>, vector<8x7xf32>
    %cst_10 = arith.constant dense<0.000000e+00> : vector<1x7xf32>
    %20 = tpu.matmul %18, %19, %cst_10 {dimension_numbers = #tpu.dot_dimension_numbers<[1], [0], [0], [1], [0, 0, 1, 1], [], []>} : vector<1x8xf32>, vector<8x7xf32>, vector<1x7xf32> -> vector<1x7xf32>
    %21 = arith.addf %0, %20 : vector<1x7xf32>
    %c1 = arith.constant 1 : index
    %22 = memref.load %arg1[%c1] : memref<3xf32, #tpu.memory_space<smem>>
    %c0_11 = arith.constant 0 : index
    %c0_12 = arith.constant 0 : index
    %c0_13 = arith.constant 0 : index
    %23 = vector.load %arg3[%c0_11, %c0_12, %c0_13] : memref<1x16x16xf32, #tpu.memory_space<vmem>>, vector<1x16x16xf32>
    %24 = vector.shape_cast %23 : vector<1x16x16xf32> to vector<16x16xf32>
    %cst_14 = arith.constant 9.99999997E-7 : f32
    %25 = vector.broadcast %cst_14 : f32 to vector<16x16xf32>
    %26 = arith.maximumf %24, %25 : vector<16x16xf32>
    %27 = math.log %26 : vector<16x16xf32>
    %28 = vector.broadcast %22 : f32 to vector<16x16xf32>
    %29 = arith.mulf %27, %28 : vector<16x16xf32>
    %30 = math.exp %29 : vector<16x16xf32>
    %cst_15 = arith.constant dense<0.000000e+00> : vector<16xf32>
    %31 = vector.multi_reduction <add>, %30, %cst_15 [0] : vector<16x16xf32> to vector<16xf32>
    %32 = vector.shape_cast %31 : vector<16xf32> to vector<1x16xf32>
    %cst_16 = arith.constant 1.600000e+01 : f32
    %33 = vector.broadcast %cst_16 : f32 to vector<1x16xf32>
    %34 = arith.divf %32, %33 : vector<1x16xf32>
    %35 = math.log %34 : vector<1x16xf32>
    %cst_17 = arith.constant 1.000000e+00 : f32
    %36 = arith.divf %cst_17, %22 : f32
    %37 = vector.broadcast %36 : f32 to vector<1x16xf32>
    %38 = arith.mulf %35, %37 : vector<1x16xf32>
    %39 = math.exp %38 : vector<1x16xf32>
    %c0_18 = arith.constant 0 : index
    %c0_19 = arith.constant 0 : index
    %40 = vector.load %arg6[%c0_18, %c0_19] : memref<16x7xf32, #tpu.memory_space<vmem>>, vector<16x7xf32>
    %cst_20 = arith.constant dense<0.000000e+00> : vector<1x7xf32>
    %41 = tpu.matmul %39, %40, %cst_20 {dimension_numbers = #tpu.dot_dimension_numbers<[1], [0], [0], [1], [0, 0, 1, 1], [], []>} : vector<1x16xf32>, vector<16x7xf32>, vector<1x7xf32> -> vector<1x7xf32>
    %42 = arith.addf %21, %41 : vector<1x7xf32>
    %c2 = arith.constant 2 : index
    %43 = memref.load %arg1[%c2] : memref<3xf32, #tpu.memory_space<smem>>
    %c0_21 = arith.constant 0 : index
    %c0_22 = arith.constant 0 : index
    %c0_23 = arith.constant 0 : index
    %44 = vector.load %arg4[%c0_21, %c0_22, %c0_23] : memref<1x4x32xf32, #tpu.memory_space<vmem>>, vector<1x4x32xf32>
    %45 = vector.shape_cast %44 : vector<1x4x32xf32> to vector<4x32xf32>
    %cst_24 = arith.constant 9.99999997E-7 : f32
    %46 = vector.broadcast %cst_24 : f32 to vector<4x32xf32>
    %47 = arith.maximumf %45, %46 : vector<4x32xf32>
    %48 = math.log %47 : vector<4x32xf32>
    %49 = vector.broadcast %43 : f32 to vector<4x32xf32>
    %50 = arith.mulf %48, %49 : vector<4x32xf32>
    %51 = math.exp %50 : vector<4x32xf32>
    %cst_25 = arith.constant dense<0.000000e+00> : vector<32xf32>
    %52 = vector.multi_reduction <add>, %51, %cst_25 [0] : vector<4x32xf32> to vector<32xf32>
    %53 = vector.shape_cast %52 : vector<32xf32> to vector<1x32xf32>
    %cst_26 = arith.constant 4.000000e+00 : f32
    %54 = vector.broadcast %cst_26 : f32 to vector<1x32xf32>
    %55 = arith.divf %53, %54 : vector<1x32xf32>
    %56 = math.log %55 : vector<1x32xf32>
    %cst_27 = arith.constant 1.000000e+00 : f32
    %57 = arith.divf %cst_27, %43 : f32
    %58 = vector.broadcast %57 : f32 to vector<1x32xf32>
    %59 = arith.mulf %56, %58 : vector<1x32xf32>
    %60 = math.exp %59 : vector<1x32xf32>
    %c0_28 = arith.constant 0 : index
    %c0_29 = arith.constant 0 : index
    %61 = vector.load %arg7[%c0_28, %c0_29] : memref<32x7xf32, #tpu.memory_space<vmem>>, vector<32x7xf32>
    %cst_30 = arith.constant dense<0.000000e+00> : vector<1x7xf32>
    %62 = tpu.matmul %60, %61, %cst_30 {dimension_numbers = #tpu.dot_dimension_numbers<[1], [0], [0], [1], [0, 0, 1, 1], [], []>} : vector<1x32xf32>, vector<32x7xf32>, vector<1x7xf32> -> vector<1x7xf32>
    %63 = arith.addf %42, %62 : vector<1x7xf32>
    %c0_31 = arith.constant 0 : index
    %c0_32 = arith.constant 0 : index
    %c0_33 = arith.constant 0 : index
    %64 = vector.load %arg9[%c0_31, %c0_32, %c0_33] : memref<1x1x7xf32, #tpu.memory_space<vmem>>, vector<1x1x7xf32>
    %65 = vector.shape_cast %64 : vector<1x1x7xf32> to vector<1x7xf32>
    %66 = vector.shape_cast %63 : vector<1x7xf32> to vector<1x1x7xf32>
    tpu.vector_store %arg9[%c0_31, %c0_32, %c0_33], %66 {strides = array<i32>} : memref<1x1x7xf32, #tpu.memory_space<vmem>>, vector<1x1x7xf32>,
    return
  }
  func.func @transform_0(%arg0: i32) -> i32 {
    %c0_i32 = arith.constant 0 : i32
    %c0_i32_0 = arith.constant 0 : i32
    return %c0_i32 : i32
  }
  func.func @transform_1(%arg0: i32) -> (i32, i32, i32) {
    %c0_i32 = arith.constant 0 : i32
    %c0_i32_0 = arith.constant 0 : i32
    %c0_i32_1 = arith.constant 0 : i32
    return %arg0, %c0_i32, %c0_i32_0 : i32, i32, i32
  }
  func.func @transform_2(%arg0: i32) -> (i32, i32, i32) {
    %c0_i32 = arith.constant 0 : i32
    %c0_i32_0 = arith.constant 0 : i32
    %c0_i32_1 = arith.constant 0 : i32
    return %arg0, %c0_i32, %c0_i32_0 : i32, i32, i32
  }
  func.func @transform_3(%arg0: i32) -> (i32, i32, i32) {
    %c0_i32 = arith.constant 0 : i32
    %c0_i32_0 = arith.constant 0 : i32
    %c0_i32_1 = arith.constant 0 : i32
    return %arg0, %c0_i32, %c0_i32_0 : i32, i32, i32
  }
  func.func @transform_4(%arg0: i32) -> (i32, i32) {
    %c0_i32 = arith.constant 0 : i32
    %c0_i32_0 = arith.constant 0 : i32
    %c0_i32_1 = arith.constant 0 : i32
    return %c0_i32, %c0_i32_0 : i32, i32
  }
  func.func @transform_5(%arg0: i32) -> (i32, i32) {
    %c0_i32 = arith.constant 0 : i32
    %c0_i32_0 = arith.constant 0 : i32
    %c0_i32_1 = arith.constant 0 : i32
    return %c0_i32, %c0_i32_0 : i32, i32
  }
  func.func @transform_6(%arg0: i32) -> (i32, i32) {
    %c0_i32 = arith.constant 0 : i32
    %c0_i32_0 = arith.constant 0 : i32
    %c0_i32_1 = arith.constant 0 : i32
    return %c0_i32, %c0_i32_0 : i32, i32
  }
  func.func @transform_7(%arg0: i32) -> (i32, i32) {
    %c0_i32 = arith.constant 0 : i32
    %c0_i32_0 = arith.constant 0 : i32
    %c0_i32_1 = arith.constant 0 : i32
    return %c0_i32, %c0_i32_0 : i32, i32
  }
  func.func @transform_8(%arg0: i32) -> (i32, i32, i32) {
    %c0_i32 = arith.constant 0 : i32
    %c0_i32_0 = arith.constant 0 : i32
    %c0_i32_1 = arith.constant 0 : i32
    return %arg0, %c0_i32, %c0_i32_0 : i32, i32, i32
  }
}

</mosaic_0001>

<llo_original>
// kernel: cnn_forward.4
$region0: #{cnn_forward.4}
  #allocation0 [shape = 'u32[]', space=smem, size = 0x4, offset = 0x4, fixed_abs, tag = 'smem constant byte address 0x4 - core index']
  #allocation1 [shape = 'u32[144,128]{1,0:T(1,128)}', space=vmem, size = 0x12000, scoped, tag = 'internal scratch']
  %s0 = inlined_call_operand.vmem [shape: bf16[128,27], index: 0, kind: input, shape index: {}]
  %s1 = inlined_call_operand.vmem [shape: bf16[27,8], index: 1, kind: input, shape index: {}]
  %s2 = inlined_call_operand.vmem [shape: f32[1,8], index: 2, kind: input, shape index: {}]
  %s3 = inlined_call_operand.vmem [shape: f32[128,8], index: 3, kind: output, shape index: {}]
  %s4 = sld [smem:[#allocation0]]
  $region22: #{cnn_forward.4} parent=0
    _
  %s6 = ssub.s32 1, %s4
  %s7 = scalar_select 0, %s6, %s4
  // Predicated region
  $region2: #{cnn_forward.4} parent=0 // pred_check
    _
  $region3: #{cnn_forward.4} parent=0 // pred_check_branch
    %9 = sbr.rel (0) target = $region5
  $region4: #{cnn_forward.4} parent=0 // pred_region
    _
  $region5: #{cnn_forward.4} parent=0 // pred_fallthru
    _
  // Predicated region
  $region6: #{cnn_forward.4} parent=0 // pred_check
    _
  $region7: #{cnn_forward.4} parent=0 // pred_check_branch
    %11 = sbr.rel (0) target = $region9
  $region8: #{cnn_forward.4} parent=0 // pred_region
    _
  $region9: #{cnn_forward.4} parent=0 // pred_fallthru
    _
  // Predicated region
  $region10: #{cnn_forward.4} parent=0 // pred_check
    _
  $region11: #{cnn_forward.4} parent=0 // pred_check_branch
    %13 = sbr.rel (0) target = $region13
  $region12: #{cnn_forward.4} parent=0 // pred_region
    _
  $region13: #{cnn_forward.4} parent=0 // pred_fallthru
    _
  %v15 = vld [vmem:[%s0] sm:$0xf]
  %v16 = vld [vmem:[%s0 + $0x4] sm:$0xf]
  %v17 = vld [vmem:[%s0 + $0x8] sm:$0xf]
  %v18 = vld [vmem:[%s0 + $0xc] sm:$0xf]
  %v19 = vld [vmem:[%s0 + $0x10] sm:$0xf]
  %v20 = vld [vmem:[%s0 + $0x14] sm:$0xf]
  %v21 = vld [vmem:[%s0 + $0x18] sm:$0xf]
  %v22 = vld [vmem:[%s0 + $0x1c] sm:$0xf]
  %v23 = vld [vmem:[%s0 + $0x20] sm:$0xf]
  %v24 = vld [vmem:[%s0 + $0x24] sm:$0xf]
  %v25 = vld [vmem:[%s0 + $0x28] sm:$0xf]
  %v26 = vld [vmem:[%s0 + $0x2c] sm:$0xf]
  %v27 = vld [vmem:[%s0 + $0x30] sm:$0xf]
  %v28 = vld [vmem:[%s0 + $0x34] sm:$0xf]
  %v29 = vld [vmem:[%s0 + $0x38] sm:$0xf]
  %v30 = vld [vmem:[%s0 + $0x3c] sm:$0xf]
  %v31 = vld [vmem:[%s1] sm:$0xf]
  %v32 = vld [vmem:[%s1 + $0x4] sm:$0xf]
  %v33 = vld [vmem:[%s1 + $0x8] sm:$0xf]
  %v34 = vld [vmem:[%s1 + $0xc] sm:$0x3]
  %v35 = vld [vmem:[%s2] sm:$0x1]
  %v37 = vlaneseq
  %v38 = vshrl.u32 %v37, 7
  %v39 = vsub.s32 0, %v38
  %v40 = vrot.slane %v35, %v39
  %v58 = vunpack.c.l.b16 %v15
  %v59 = vunpack.c.l.b16 %v16
  %v60 = vunpack.c.l.b16 %v17
  %v61 = vunpack.c.l.b16 %v18
  %v62 = vunpack.c.l.b16 %v19
  %v63 = vunpack.c.l.b16 %v20
  %v64 = vunpack.c.l.b16 %v21
  %v65 = vunpack.c.l.b16 %v22
  %v66 = vunpack.c.l.b16 %v23
  %v67 = vunpack.c.l.b16 %v24
  %v68 = vunpack.c.l.b16 %v25
  %v69 = vunpack.c.l.b16 %v26
  %v70 = vunpack.c.l.b16 %v27
  %v71 = vunpack.c.l.b16 %v28
  %v72 = vunpack.c.l.b16 %v29
  %v73 = vunpack.c.l.b16 %v30
  %v74 = vpack.c.b16 %v59, %v58
  %v75 = vpack.c.b16 %v61, %v60
  %v76 = vpack.c.b16 %v63, %v62
  %v77 = vpack.c.b16 %v65, %v64
  %v78 = vpack.c.b16 %v67, %v66
  %v79 = vpack.c.b16 %v69, %v68
  %v80 = vpack.c.b16 %v71, %v70
  %v81 = vpack.c.b16 %v73, %v72
  %v86 = vunpack.c.l.b16 %v31
  %v87 = vunpack.c.l.b16 %v32
  %v88 = vunpack.c.l.b16 %v33
  %v89 = vunpack.c.l.b16 %v34
  %v90 = vpack.c.b16 %v87, %v86
  %v91 = vpack.c.b16 %v89, %v88
  %vm93 = vcmask 220160
  %v95 = vsel %vm93, %v74, 0
  %v98 = vsel %vm93, %v75, 0
  %v101 = vsel %vm93, %v76, 0
  %v104 = vsel %vm93, %v77, 0
  %v107 = vsel %vm93, %v78, 0
  %v110 = vsel %vm93, %v79, 0
  %v113 = vsel %vm93, %v80, 0
  %v116 = vsel %vm93, %v81, 0
  %vm118 = vcmask 1044480
  %vm119 = vcmask 1045504
  %v120 = vsel %vm118, 4294967295, 65535
  %v121 = vsel %vm119, %v120, 0
  %v123 = vand.u32 %v91, %v121
  %125 = vmatprep.subr.bf16.mxu0 0
  %126 = vmatpush1.bf16.msra.mxu0 %v90
  %127 = vmatprep.subr.bf16.mxu0 0
  %128 = vmatpush1.bf16.msra.mxu0 %v123
  %129 = vmatprep.subr.bf16.mxu0 0
  %130 = vmatpush1.bf16.msra.mxu0 0
  %131 = vmatprep.subr.bf16.mxu0 0
  %132 = vmatpush1.bf16.msra.mxu0 0
  %133 = vmatprep.subr.bf16.mxu0 0
  %134 = vmatpush1.bf16.msra.mxu0 0
  %135 = vmatprep.subr.bf16.mxu0 0
  %136 = vmatpush1.bf16.msra.mxu0 0
  %137 = vmatprep.subr.bf16.mxu0 0
  %138 = vmatpush1.bf16.msra.mxu0 0
  %139 = vmatprep.subr.bf16.mxu0 0
  %140 = vmatpush1.bf16.msra.mxu0 0
  %141 = vmatprep.subr.bf16.mxu0 0
  %142 = vmatpush1.bf16.msra.mxu0 0
  %143 = vmatprep.subr.bf16.mxu0 0
  %144 = vmatpush1.bf16.msra.mxu0 0
  %145 = vmatprep.subr.bf16.mxu0 0
  %146 = vmatpush1.bf16.msra.mxu0 0
  %147 = vmatprep.subr.bf16.mxu0 0
  %148 = vmatpush1.bf16.msra.mxu0 0
  %149 = vmatprep.subr.bf16.mxu0 0
  %150 = vmatpush1.bf16.msra.mxu0 0
  %151 = vmatprep.subr.bf16.mxu0 0
  %152 = vmatpush1.bf16.msra.mxu0 0
  %153 = vmatprep.subr.bf16.mxu0 0
  %154 = vmatpush1.bf16.msra.mxu0 0
  %155 = vmatprep.subr.bf16.mxu0 0
  %156 = vmatpush1.bf16.msra.mxu0 0
  %157 = vmatprep.mubr.bf16.mxu0 0
  %158 = vmatmul.mubr.bf16.gmra.mrb[0].mxu0 %v95
  %v159 = vpop.f32.mrb[0].mxu0
  %v160 = vadd.f32 %v40, %v159
  %v161 = vpop.f32.mrb[0].mxu0
  %v162 = vpop.f32.mrb[0].mxu0
  %v163 = vadd.f32 %v40, %v162
  %v164 = vpop.f32.mrb[0].mxu0
  %165 = vmatprep.mubr.bf16.mxu0 0
  %166 = vmatmul.mubr.bf16.gmra.mrb[0].mxu0 %v98
  %v167 = vpop.f32.mrb[0].mxu0
  %v168 = vadd.f32 %v40, %v167
  %v169 = vpop.f32.mrb[0].mxu0
  %v170 = vpop.f32.mrb[0].mxu0
  %v171 = vadd.f32 %v40, %v170
  %v172 = vpop.f32.mrb[0].mxu0
  %173 = vmatprep.mubr.bf16.mxu0 0
  %174 = vmatmul.mubr.bf16.gmra.mrb[0].mxu0 %v101
  %v175 = vpop.f32.mrb[0].mxu0
  %v176 = vadd.f32 %v40, %v175
  %v177 = vpop.f32.mrb[0].mxu0
  %v178 = vpop.f32.mrb[0].mxu0
  %v179 = vadd.f32 %v40, %v178
  %v180 = vpop.f32.mrb[0].mxu0
  %181 = vmatprep.mubr.bf16.mxu0 0
  %182 = vmatmul.mubr.bf16.gmra.mrb[0].mxu0 %v104
  %v183 = vpop.f32.mrb[0].mxu0
  %v184 = vadd.f32 %v40, %v183
  %v185 = vpop.f32.mrb[0].mxu0
  %v186 = vpop.f32.mrb[0].mxu0
  %v187 = vadd.f32 %v40, %v186
  %v188 = vpop.f32.mrb[0].mxu0
  %189 = vmatprep.mubr.bf16.mxu0 0
  %190 = vmatmul.mubr.bf16.gmra.mrb[0].mxu0 %v107
  %v191 = vpop.f32.mrb[0].mxu0
  %v192 = vadd.f32 %v40, %v191
  %v193 = vpop.f32.mrb[0].mxu0
  %v194 = vpop.f32.mrb[0].mxu0
  %v195 = vadd.f32 %v40, %v194
  %v196 = vpop.f32.mrb[0].mxu0
  %197 = vmatprep.mubr.bf16.mxu0 0
  %198 = vmatmul.mubr.bf16.gmra.mrb[0].mxu0 %v110
  %v199 = vpop.f32.mrb[0].mxu0
  %v200 = vadd.f32 %v40, %v199
  %v201 = vpop.f32.mrb[0].mxu0
  %v202 = vpop.f32.mrb[0].mxu0
  %v203 = vadd.f32 %v40, %v202
  %v204 = vpop.f32.mrb[0].mxu0
  %205 = vmatprep.mubr.bf16.mxu0 0
  %206 = vmatmul.mubr.bf16.gmra.mrb[0].mxu0 %v113
  %v207 = vpop.f32.mrb[0].mxu0
  %v208 = vadd.f32 %v40, %v207
  %v209 = vpop.f32.mrb[0].mxu0
  %v210 = vpop.f32.mrb[0].mxu0
  %v211 = vadd.f32 %v40, %v210
  %v212 = vpop.f32.mrb[0].mxu0
  %213 = vmatprep.mubr.bf16.mxu0 0
  %214 = vmatmul.mubr.bf16.gmra.mrb[0].mxu0 %v116
  %v215 = vpop.f32.mrb[0].mxu0
  %v216 = vadd.f32 %v40, %v215
  %v217 = vpop.f32.mrb[0].mxu0
  %v218 = vpop.f32.mrb[0].mxu0
  %v219 = vadd.f32 %v40, %v218
  %v220 = vpop.f32.mrb[0].mxu0
  %221 = vdwg.mxu0
  %v222 = vmax.f32 %v160, 0.0
  %v223 = vmax.f32 %v163, 0.0
  %v224 = vmax.f32 %v168, 0.0
  %v225 = vmax.f32 %v171, 0.0
  %v226 = vmax.f32 %v176, 0.0
  %v227 = vmax.f32 %v179, 0.0
  %v228 = vmax.f32 %v184, 0.0
  %v229 = vmax.f32 %v187, 0.0
  %v230 = vmax.f32 %v192, 0.0
  %v231 = vmax.f32 %v195, 0.0
  %v232 = vmax.f32 %v200, 0.0
  %v233 = vmax.f32 %v203, 0.0
  %v234 = vmax.f32 %v208, 0.0
  %v235 = vmax.f32 %v211, 0.0
  %v236 = vmax.f32 %v216, 0.0
  %v237 = vmax.f32 %v219, 0.0
  %vm238 = vcmask 64512
  %239 = vst.msk [vmem:[%s3] sm:$0xff] %vm238, %v222
  %240 = vst.msk [vmem:[%s3 + $0x8] sm:$0xff] %vm238, %v223
  %241 = vst.msk [vmem:[%s3 + $0x10] sm:$0xff] %vm238, %v224
  %242 = vst.msk [vmem:[%s3 + $0x18] sm:$0xff] %vm238, %v225
  %243 = vst.msk [vmem:[%s3 + $0x20] sm:$0xff] %vm238, %v226
  %244 = vst.msk [vmem:[%s3 + $0x28] sm:$0xff] %vm238, %v227
  %245 = vst.msk [vmem:[%s3 + $0x30] sm:$0xff] %vm238, %v228
  %246 = vst.msk [vmem:[%s3 + $0x38] sm:$0xff] %vm238, %v229
  %247 = vst.msk [vmem:[%s3 + $0x40] sm:$0xff] %vm238, %v230
  %248 = vst.msk [vmem:[%s3 + $0x48] sm:$0xff] %vm238, %v231
  %249 = vst.msk [vmem:[%s3 + $0x50] sm:$0xff] %vm238, %v232
  %250 = vst.msk [vmem:[%s3 + $0x58] sm:$0xff] %vm238, %v233
  %251 = vst.msk [vmem:[%s3 + $0x60] sm:$0xff] %vm238, %v234
  %252 = vst.msk [vmem:[%s3 + $0x68] sm:$0xff] %vm238, %v235
  %253 = vst.msk [vmem:[%s3 + $0x70] sm:$0xff] %vm238, %v236
  %254 = vst.msk [vmem:[%s3 + $0x78] sm:$0xff] %vm238, %v237
  // Predicated region
  $region14: #{cnn_forward.4} parent=0 // pred_check
    _
  $region15: #{cnn_forward.4} parent=0 // pred_check_branch
    %256 = sbr.rel (0) target = $region17
  $region16: #{cnn_forward.4} parent=0 // pred_region
    _
  $region17: #{cnn_forward.4} parent=0 // pred_fallthru
    _
  // Predicated region
  $region18: #{cnn_forward.4} parent=0 // pred_check
    _
  $region19: #{cnn_forward.4} parent=0 // pred_check_branch
    %258 = sbr.rel (0) target = $region21
  $region20: #{cnn_forward.4} parent=0 // pred_region
    _
  $region21: #{cnn_forward.4} parent=0 // pred_fallthru
    _

// kernel: cnn_forward.5
$region0: #{cnn_forward.5}
  #allocation0 [shape = 'u32[]', space=smem, size = 0x4, offset = 0x4, fixed_abs, tag = 'smem constant byte address 0x4 - core index']
  #allocation1 [shape = 'u32[144,128]{1,0:T(1,128)}', space=vmem, size = 0x12000, scoped, tag = 'internal scratch']
  %s0 = inlined_call_operand.vmem [shape: bf16[32,72], index: 0, kind: input, shape index: {}]
  %s1 = inlined_call_operand.vmem [shape: bf16[72,16], index: 1, kind: input, shape index: {}]
  %s2 = inlined_call_operand.vmem [shape: f32[1,16], index: 2, kind: input, shape index: {}]
  %s3 = inlined_call_operand.vmem [shape: f32[32,16], index: 3, kind: output, shape index: {}]
  %s4 = sld [smem:[#allocation0]]
  $region22: #{cnn_forward.5} parent=0
    _
  %s6 = ssub.s32 1, %s4
  %s7 = scalar_select 0, %s6, %s4
  // Predicated region
  $region2: #{cnn_forward.5} parent=0 // pred_check
    _
  $region3: #{cnn_forward.5} parent=0 // pred_check_branch
    %9 = sbr.rel (0) target = $region5
  $region4: #{cnn_forward.5} parent=0 // pred_region
    _
  $region5: #{cnn_forward.5} parent=0 // pred_fallthru
    _
  // Predicated region
  $region6: #{cnn_forward.5} parent=0 // pred_check
    _
  $region7: #{cnn_forward.5} parent=0 // pred_check_branch
    %11 = sbr.rel (0) target = $region9
  $region8: #{cnn_forward.5} parent=0 // pred_region
    _
  $region9: #{cnn_forward.5} parent=0 // pred_fallthru
    _
  // Predicated region
  $region10: #{cnn_forward.5} parent=0 // pred_check
    _
  $region11: #{cnn_forward.5} parent=0 // pred_check_branch
    %13 = sbr.rel (0) target = $region13
  $region12: #{cnn_forward.5} parent=0 // pred_region
    _
  $region13: #{cnn_forward.5} parent=0 // pred_fallthru
    _
  %v15 = vld [vmem:[%s0] sm:$0xf]
  %v16 = vld [vmem:[%s0 + $0x4] sm:$0xf]
  %v17 = vld [vmem:[%s0 + $0x8] sm:$0xf]
  %v18 = vld [vmem:[%s0 + $0xc] sm:$0xf]
  %v19 = vld [vmem:[%s1] sm:$0xf]
  %v20 = vld [vmem:[%s1 + $0x4] sm:$0xf]
  %v21 = vld [vmem:[%s1 + $0x8] sm:$0xf]
  %v22 = vld [vmem:[%s1 + $0xc] sm:$0xf]
  %v23 = vld [vmem:[%s1 + $0x10] sm:$0xf]
  %v24 = vld [vmem:[%s1 + $0x14] sm:$0xf]
  %v25 = vld [vmem:[%s1 + $0x18] sm:$0xf]
  %v26 = vld [vmem:[%s1 + $0x1c] sm:$0xf]
  %v27 = vld [vmem:[%s1 + $0x20] sm:$0xf]
  %v28 = vld [vmem:[%s2] sm:$0x1]
  %v30 = vlaneseq
  %v31 = vshrl.u32 %v30, 7
  %v32 = vsub.s32 0, %v31
  %v33 = vrot.slane %v28, %v32
  %v39 = vunpack.c.l.b16 %v15
  %v40 = vunpack.c.l.b16 %v16
  %v41 = vunpack.c.l.b16 %v17
  %v42 = vunpack.c.l.b16 %v18
  %v43 = vpack.c.b16 %v40, %v39
  %v44 = vpack.c.b16 %v42, %v41
  %v54 = vunpack.c.l.b16 %v19
  %v55 = vunpack.c.l.b16 %v20
  %v56 = vunpack.c.l.b16 %v21
  %v57 = vunpack.c.l.b16 %v22
  %v58 = vunpack.c.l.b16 %v23
  %v59 = vunpack.c.l.b16 %v24
  %v60 = vunpack.c.l.b16 %v25
  %v61 = vunpack.c.l.b16 %v26
  %v62 = vunpack.c.l.b16 %v27
  %v63 = vpack.c.b16 %v55, %v54
  %v64 = vpack.c.b16 %v57, %v56
  %v65 = vpack.c.b16 %v59, %v58
  %v66 = vpack.c.b16 %v61, %v60
  %v67 = vpack.c.b16 %v62, %v62
  %vm72 = vcmask 588800
  %v74 = vsel %vm72, %v43, 0
  %v77 = vsel %vm72, %v44, 0
  %vm79 = vcmask 1043456
  %v81 = vsel %vm79, %v67, 0
  %83 = vmatprep.subr.bf16.mxu0 0
  %84 = vmatpush1.bf16.msra.mxu0 %v63
  %85 = vmatprep.subr.bf16.mxu0 0
  %86 = vmatpush1.bf16.msra.mxu0 %v64
  %87 = vmatprep.subr.bf16.mxu0 0
  %88 = vmatpush1.bf16.msra.mxu0 %v65
  %89 = vmatprep.subr.bf16.mxu0 0
  %90 = vmatpush1.bf16.msra.mxu0 %v66
  %91 = vmatprep.subr.bf16.mxu0 0
  %92 = vmatpush1.bf16.msra.mxu0 %v81
  %93 = vmatprep.subr.bf16.mxu0 0
  %94 = vmatpush1.bf16.msra.mxu0 0
  %95 = vmatprep.subr.bf16.mxu0 0
  %96 = vmatpush1.bf16.msra.mxu0 0
  %97 = vmatprep.subr.bf16.mxu0 0
  %98 = vmatpush1.bf16.msra.mxu0 0
  %99 = vmatprep.subr.bf16.mxu0 0
  %100 = vmatpush1.bf16.msra.mxu0 0
  %101 = vmatprep.subr.bf16.mxu0 0
  %102 = vmatpush1.bf16.msra.mxu0 0
  %103 = vmatprep.subr.bf16.mxu0 0
  %104 = vmatpush1.bf16.msra.mxu0 0
  %105 = vmatprep.subr.bf16.mxu0 0
  %106 = vmatpush1.bf16.msra.mxu0 0
  %107 = vmatprep.subr.bf16.mxu0 0
  %108 = vmatpush1.bf16.msra.mxu0 0
  %109 = vmatprep.subr.bf16.mxu0 0
  %110 = vmatpush1.bf16.msra.mxu0 0
  %111 = vmatprep.subr.bf16.mxu0 0
  %112 = vmatpush1.bf16.msra.mxu0 0
  %113 = vmatprep.subr.bf16.mxu0 0
  %114 = vmatpush1.bf16.msra.mxu0 0
  %115 = vmatprep.mubr.bf16.mxu0 0
  %116 = vmatmul.mubr.bf16.gmra.mrb[0].mxu0 %v74
  %v117 = vpop.f32.mrb[0].mxu0
  %v118 = vadd.f32 %v33, %v117
  %v119 = vpop.f32.mrb[0].mxu0
  %v120 = vpop.f32.mrb[0].mxu0
  %v121 = vadd.f32 %v33, %v120
  %v122 = vpop.f32.mrb[0].mxu0
  %123 = vmatprep.mubr.bf16.mxu0 0
  %124 = vmatmul.mubr.bf16.gmra.mrb[0].mxu0 %v77
  %v125 = vpop.f32.mrb[0].mxu0
  %v126 = vadd.f32 %v33, %v125
  %v127 = vpop.f32.mrb[0].mxu0
  %v128 = vpop.f32.mrb[0].mxu0
  %v129 = vadd.f32 %v33, %v128
  %v130 = vpop.f32.mrb[0].mxu0
  %131 = vdwg.mxu0
  %v132 = vmax.f32 %v118, 0.0
  %v133 = vmax.f32 %v121, 0.0
  %v134 = vmax.f32 %v126, 0.0
  %v135 = vmax.f32 %v129, 0.0
  %vm136 = vcmask 130048
  %137 = vst.msk [vmem:[%s3] sm:$0xff] %vm136, %v132
  %138 = vst.msk [vmem:[%s3 + $0x8] sm:$0xff] %vm136, %v133
  %139 = vst.msk [vmem:[%s3 + $0x10] sm:$0xff] %vm136, %v134
  %140 = vst.msk [vmem:[%s3 + $0x18] sm:$0xff] %vm136, %v135
  // Predicated region
  $region14: #{cnn_forward.5} parent=0 // pred_check
    _
  $region15: #{cnn_forward.5} parent=0 // pred_check_branch
    %142 = sbr.rel (0) target = $region17
  $region16: #{cnn_forward.5} parent=0 // pred_region
    _
  $region17: #{cnn_forward.5} parent=0 // pred_fallthru
    _
  // Predicated region
  $region18: #{cnn_forward.5} parent=0 // pred_check
    _
  $region19: #{cnn_forward.5} parent=0 // pred_check_branch
    %144 = sbr.rel (0) target = $region21
  $region20: #{cnn_forward.5} parent=0 // pred_region
    _
  $region21: #{cnn_forward.5} parent=0 // pred_fallthru
    _

// kernel: cnn_forward.6
$region0: #{cnn_forward.6}
  #allocation0 [shape = 'u32[]', space=smem, size = 0x4, offset = 0x4, fixed_abs, tag = 'smem constant byte address 0x4 - core index']
  #allocation1 [shape = 'u32[144,128]{1,0:T(1,128)}', space=vmem, size = 0x12000, scoped, tag = 'internal scratch']
  %s0 = inlined_call_operand.vmem [shape: bf16[8,144], index: 0, kind: input, shape index: {}]
  %s1 = inlined_call_operand.vmem [shape: bf16[144,32], index: 1, kind: input, shape index: {}]
  %s2 = inlined_call_operand.vmem [shape: f32[1,32], index: 2, kind: input, shape index: {}]
  %s3 = inlined_call_operand.vmem [shape: f32[8,32], index: 3, kind: output, shape index: {}]
  %s4 = sld [smem:[#allocation0]]
  $region22: #{cnn_forward.6} parent=0
    _
  %s6 = ssub.s32 1, %s4
  %s7 = scalar_select 0, %s6, %s4
  // Predicated region
  $region2: #{cnn_forward.6} parent=0 // pred_check
    _
  $region3: #{cnn_forward.6} parent=0 // pred_check_branch
    %9 = sbr.rel (0) target = $region5
  $region4: #{cnn_forward.6} parent=0 // pred_region
    _
  $region5: #{cnn_forward.6} parent=0 // pred_fallthru
    _
  // Predicated region
  $region6: #{cnn_forward.6} parent=0 // pred_check
    _
  $region7: #{cnn_forward.6} parent=0 // pred_check_branch
    %11 = sbr.rel (0) target = $region9
  $region8: #{cnn_forward.6} parent=0 // pred_region
    _
  $region9: #{cnn_forward.6} parent=0 // pred_fallthru
    _
  // Predicated region
  $region10: #{cnn_forward.6} parent=0 // pred_check
    _
  $region11: #{cnn_forward.6} parent=0 // pred_check_branch
    %13 = sbr.rel (0) target = $region13
  $region12: #{cnn_forward.6} parent=0 // pred_region
    _
  $region13: #{cnn_forward.6} parent=0 // pred_fallthru
    _
  %v15 = vld [vmem:[%s0] sm:$0xff]
  %v16 = vld [vmem:[%s1] sm:$0xf]
  %v17 = vld [vmem:[%s1 + $0x4] sm:$0xf]
  %v18 = vld [vmem:[%s1 + $0x8] sm:$0xf]
  %v19 = vld [vmem:[%s1 + $0xc] sm:$0xf]
  %v20 = vld [vmem:[%s1 + $0x10] sm:$0xf]
  %v21 = vld [vmem:[%s1 + $0x14] sm:$0xf]
  %v22 = vld [vmem:[%s1 + $0x18] sm:$0xf]
  %v23 = vld [vmem:[%s1 + $0x1c] sm:$0xf]
  %v24 = vld [vmem:[%s1 + $0x20] sm:$0xf]
  %v25 = vld [vmem:[%s1 + $0x24] sm:$0xf]
  %v26 = vld [vmem:[%s1 + $0x28] sm:$0xf]
  %v27 = vld [vmem:[%s1 + $0x2c] sm:$0xf]
  %v28 = vld [vmem:[%s1 + $0x30] sm:$0xf]
  %v29 = vld [vmem:[%s1 + $0x34] sm:$0xf]
  %v30 = vld [vmem:[%s1 + $0x38] sm:$0xf]
  %v31 = vld [vmem:[%s1 + $0x3c] sm:$0xf]
  %v32 = vld [vmem:[%s1 + $0x40] sm:$0xf]
  %v33 = vld [vmem:[%s1 + $0x44] sm:$0xf]
  %v34 = vld [vmem:[%s2] sm:$0x1]
  %v36 = vlaneseq
  %v37 = vshrl.u32 %v36, 7
  %v38 = vsub.s32 0, %v37
  %v39 = vrot.slane %v34, %v38
  %v42 = vunpack.c.l.b16 %v15
  %v43 = vunpack.c.h.b16 %v15
  %v44 = vpack.c.b16 %v42, %v42
  %v45 = vpack.c.b16 %v43, %v43
  %v65 = vunpack.c.l.b16 %v16
  %v66 = vunpack.c.l.b16 %v17
  %v67 = vunpack.c.l.b16 %v18
  %v68 = vunpack.c.l.b16 %v19
  %v69 = vunpack.c.l.b16 %v20
  %v70 = vunpack.c.l.b16 %v21
  %v71 = vunpack.c.l.b16 %v22
  %v72 = vunpack.c.l.b16 %v23
  %v73 = vunpack.c.l.b16 %v24
  %v74 = vunpack.c.l.b16 %v25
  %v75 = vunpack.c.l.b16 %v26
  %v76 = vunpack.c.l.b16 %v27
  %v77 = vunpack.c.l.b16 %v28
  %v78 = vunpack.c.l.b16 %v29
  %v79 = vunpack.c.l.b16 %v30
  %v80 = vunpack.c.l.b16 %v31
  %v81 = vunpack.c.l.b16 %v32
  %v82 = vunpack.c.l.b16 %v33
  %v83 = vpack.c.b16 %v66, %v65
  %v84 = vpack.c.b16 %v68, %v67
  %v85 = vpack.c.b16 %v70, %v69
  %v86 = vpack.c.b16 %v72, %v71
  %v87 = vpack.c.b16 %v74, %v73
  %v88 = vpack.c.b16 %v76, %v75
  %v89 = vpack.c.b16 %v78, %v77
  %v90 = vpack.c.b16 %v80, %v79
  %v91 = vpack.c.b16 %v82, %v81
  %vm101 = vcmask 130048
  %v103 = vsel %vm101, %v45, 0
  %105 = vmatprep.subr.bf16.mxu0 0
  %106 = vmatpush1.bf16.msra.mxu0 %v83
  %107 = vmatprep.subr.bf16.mxu0 0
  %108 = vmatpush1.bf16.msra.mxu0 %v84
  %109 = vmatprep.subr.bf16.mxu0 0
  %110 = vmatpush1.bf16.msra.mxu0 %v85
  %111 = vmatprep.subr.bf16.mxu0 0
  %112 = vmatpush1.bf16.msra.mxu0 %v86
  %113 = vmatprep.subr.bf16.mxu0 0
  %114 = vmatpush1.bf16.msra.mxu0 %v87
  %115 = vmatprep.subr.bf16.mxu0 0
  %116 = vmatpush1.bf16.msra.mxu0 %v88
  %117 = vmatprep.subr.bf16.mxu0 0
  %118 = vmatpush1.bf16.msra.mxu0 %v89
  %119 = vmatprep.subr.bf16.mxu0 0
  %120 = vmatpush1.bf16.msra.mxu0 %v90
  %121 = vmatprep.subr.bf16.mxu0 0
  %122 = vmatpush1.bf16.msra.mxu0 %v91
  %123 = vmatprep.subr.bf16.mxu0 0
  %124 = vmatpush1.bf16.msra.mxu0 0
  %125 = vmatprep.subr.bf16.mxu0 0
  %126 = vmatpush1.bf16.msra.mxu0 0
  %127 = vmatprep.subr.bf16.mxu0 0
  %128 = vmatpush1.bf16.msra.mxu0 0
  %129 = vmatprep.subr.bf16.mxu0 0
  %130 = vmatpush1.bf16.msra.mxu0 0
  %131 = vmatprep.subr.bf16.mxu0 0
  %132 = vmatpush1.bf16.msra.mxu0 0
  %133 = vmatprep.subr.bf16.mxu0 0
  %134 = vmatpush1.bf16.msra.mxu0 0
  %135 = vmatprep.subr.bf16.mxu0 0
  %136 = vmatpush1.bf16.msra.mxu0 0
  %137 = vmatprep.mubr.bf16.mxu0 %v103
  %138 = vmatmul.mubr.bf16.gmra.mrb[0].mxu0 %v44
  %v139 = vpop.f32.mrb[0].mxu0
  %v140 = vadd.f32 %v39, %v139
  %v141 = vpop.f32.mrb[0].mxu0
  %v142 = vpop.f32.mrb[0].mxu0
  %v143 = vpop.f32.mrb[0].mxu0
  %144 = vdwg.mxu0
  %v145 = vmax.f32 %v140, 0.0
  %vm146 = vcmask 261120
  %147 = vst.msk [vmem:[%s3] sm:$0xff] %vm146, %v145
  // Predicated region
  $region14: #{cnn_forward.6} parent=0 // pred_check
    _
  $region15: #{cnn_forward.6} parent=0 // pred_check_branch
    %149 = sbr.rel (0) target = $region17
  $region16: #{cnn_forward.6} parent=0 // pred_region
    _
  $region17: #{cnn_forward.6} parent=0 // pred_fallthru
    _
  // Predicated region
  $region18: #{cnn_forward.6} parent=0 // pred_check
    _
  $region19: #{cnn_forward.6} parent=0 // pred_check_branch
    %151 = sbr.rel (0) target = $region21
  $region20: #{cnn_forward.6} parent=0 // pred_region
    _
  $region21: #{cnn_forward.6} parent=0 // pred_fallthru
    _

// kernel: cnn_forward.7
$region0: #{cnn_forward.7}
  #allocation0 [shape = 'u32[]', space=smem, size = 0x4, offset = 0x4, fixed_abs, tag = 'smem constant byte address 0x4 - core index']
  #allocation1 [shape = 'u32[144,128]{1,0:T(1,128)}', space=vmem, size = 0x12000, scoped, tag = 'internal scratch']
  %s0 = inlined_call_operand.vmem [shape: f32[3], index: 0, kind: input, shape index: {}]
  %s1 = inlined_call_operand.vmem [shape: f32[2,64,8], index: 1, kind: input, shape index: {}]
  %s2 = inlined_call_operand.vmem [shape: f32[2,16,16], index: 2, kind: input, shape index: {}]
  %s3 = inlined_call_operand.vmem [shape: f32[2,4,32], index: 3, kind: input, shape index: {}]
  %s4 = inlined_call_operand.vmem [shape: f32[8,7], index: 4, kind: input, shape index: {}]
  %s5 = inlined_call_operand.vmem [shape: f32[16,7], index: 5, kind: input, shape index: {}]
  %s6 = inlined_call_operand.vmem [shape: f32[32,7], index: 6, kind: input, shape index: {}]
  %s7 = inlined_call_operand.vmem [shape: f32[1,7], index: 7, kind: input, shape index: {}]
  %s8 = inlined_call_operand.hbm [shape: f32[2,1,7], index: 8, kind: output, shape index: {}]
  %s9 = sld [smem:[#allocation0]]
  $region69: #{cnn_forward.7} parent=0
    _
  %s11 = ssub.s32 1, %s9
  %s12 = scalar_select 0, %s11, %s9
  $region1: #{cnn_forward.7} parent=0
    #allocation2 [shape = 'u8[512]{0}', space=smem, size = 0x200, scoped, tag = 'input window, operand 0, single buffered']
    #allocation3 [shape = 's32[2]{0}', space=sflag, size = 0x8, scoped, tag = 'scoped memory for cnn_forward.7']
    #allocation4 [shape = 's32[2]{0}', space=sflag, size = 0x8, scoped, tag = 'scoped memory for cnn_forward.7']
    #allocation5 [shape = 'u8[1024]{0}', space=vmem, size = 0x400, scoped, tag = 'output window, operand 0']
    %13 = vsyncpa [#allocation4], 0
    %14 = vsyncpa [#allocation3], 0
    %s15 = scalar_lea.sflag [#allocation3], 1
    %16 = vsyncpa %s15, 0
    loop: start=0, step=1, limit=4
    $region2: #{cnn_forward.7} parent=1 // loop_pre_header
      _
    $region3: #{cnn_forward.7} parent=1 // loop_header
      %s18 = sphi 0, %s22
      %p19 = scmp.ge.s32.totalorder %s18, 4
      %s26 = sphi 0, %s26
      %s28 = sphi 0, %s26
      %s29 = sphi 0, %s28
      %s43 = sphi 0, %s29
      %s49 = sphi 0, %s51
      %s52 = sphi 0, %s49
      %s53 = sphi 0, %s52
      %s69 = sphi 0, %s53
      %s75 = sphi 0, %s77
      %s78 = sphi 0, %s75
      %s79 = sphi 0, %s78
      %s95 = sphi 0, %s79
      %s101 = sphi 0, %s103
      %s104 = sphi 0, %s101
      %s105 = sphi 0, %s104
      %s121 = sphi 0, %s105
      %s125 = sphi 0, %s125
      %s127 = sphi 0, %s125
      %s128 = sphi 0, %s127
      %s142 = sphi 0, %s128
      %s146 = sphi 0, %s146
      %s148 = sphi 0, %s146
      %s149 = sphi 0, %s148
      %s163 = sphi 0, %s149
      %s167 = sphi 0, %s167
      %s169 = sphi 0, %s167
      %s170 = sphi 0, %s169
      %s184 = sphi 0, %s170
      %s188 = sphi 0, %s188
      %s190 = sphi 0, %s188
      %s191 = sphi 0, %s190
      %s205 = sphi 0, %s191
      %s211 = sphi 0, %s213
      %s214 = sphi 0, %s211
      %s215 = sphi 0, %s214
      %s231 = sphi 0, %s215
    $region4: #{cnn_forward.7} parent=1 // loop_header_branch
      %21 = sbr.rel (%p19) target = $region8
    $region5: #{cnn_forward.7} parent=1 // loop_body
      %s23 = ssub.s32 %s18, 1
      %s24 = ssub.s32 %s18, 2
      %s25 = sadd.s32 %s18, 1
      %s27 = sadd.s32 %s26, 1
      %p30 = scmp.eq.s32.totalorder %s18, 1
      %p31 = scmp.ne.s32.totalorder %s26, %s28
      %p32 = scmp.eq.s32.totalorder %s18, 0
      %p33 = por %p31, %p32
      %p34 = scmp.ne.s32.totalorder %s26, %s28
      %p35 = scmp.eq.s32.totalorder %s23, 1
      %p36 = por %p34, %p35
      %p37 = scmp.ne.s32.totalorder %s28, %s29
      %p38 = scmp.eq.s32.totalorder %s23, 0
      %p39 = por %p37, %p38
      %p40 = scmp.ne.s32.totalorder %s28, %s29
      %p41 = scmp.eq.s32.totalorder %s24, 1
      %p42 = por %p40, %p41
      %p44 = scmp.ne.s32.totalorder %s29, %s43
      %p45 = scmp.eq.s32.totalorder %s24, 0
      %p46 = por %p44, %p45
      %s47 = ssub.s32 %s18, %s25
      %p48 = scmp.eq.s32.totalorder %s47, 0
      %s50 = sadd.s32 %s49, 1
      %s51 = scalar_select %p48, %s49, %s50
      %p54 = pneg %p48
      %p55 = scmp.eq.s32.totalorder %s18, 1
      %p56 = por %p54, %p55
      %p57 = scmp.ne.s32.totalorder %s49, %s52
      %p58 = scmp.eq.s32.totalorder %s18, 0
      %p59 = por %p57, %p58
      %p60 = scmp.ne.s32.totalorder %s49, %s52
      %p61 = scmp.eq.s32.totalorder %s23, 1
      %p62 = por %p60, %p61
      %p63 = scmp.ne.s32.totalorder %s52, %s53
      %p64 = scmp.eq.s32.totalorder %s23, 0
      %p65 = por %p63, %p64
      %p66 = scmp.ne.s32.totalorder %s52, %s53
      %p67 = scmp.eq.s32.totalorder %s24, 1
      %p68 = por %p66, %p67
      %p70 = scmp.ne.s32.totalorder %s53, %s69
      %p71 = scmp.eq.s32.totalorder %s24, 0
      %p72 = por %p70, %p71
      %s73 = ssub.s32 %s18, %s25
      %p74 = scmp.eq.s32.totalorder %s73, 0
      %s76 = sadd.s32 %s75, 1
      %s77 = scalar_select %p74, %s75, %s76
      %p80 = pneg %p74
      %p81 = scmp.eq.s32.totalorder %s18, 1
      %p82 = por %p80, %p81
      %p83 = scmp.ne.s32.totalorder %s75, %s78
      %p84 = scmp.eq.s32.totalorder %s18, 0
      %p85 = por %p83, %p84
      %p86 = scmp.ne.s32.totalorder %s75, %s78
      %p87 = scmp.eq.s32.totalorder %s23, 1
      %p88 = por %p86, %p87
      %p89 = scmp.ne.s32.totalorder %s78, %s79
      %p90 = scmp.eq.s32.totalorder %s23, 0
      %p91 = por %p89, %p90
      %p92 = scmp.ne.s32.totalorder %s78, %s79
      %p93 = scmp.eq.s32.totalorder %s24, 1
      %p94 = por %p92, %p93
      %p96 = scmp.ne.s32.totalorder %s79, %s95
      %p97 = scmp.eq.s32.totalorder %s24, 0
      %p98 = por %p96, %p97
      %s99 = ssub.s32 %s18, %s25
      %p100 = scmp.eq.s32.totalorder %s99, 0
      %s102 = sadd.s32 %s101, 1
      %s103 = scalar_select %p100, %s101, %s102
      %p106 = pneg %p100
      %p107 = scmp.eq.s32.totalorder %s18, 1
      %p108 = por %p106, %p107
      %p109 = scmp.ne.s32.totalorder %s101, %s104
      %p110 = scmp.eq.s32.totalorder %s18, 0
      %p111 = por %p109, %p110
      %p112 = scmp.ne.s32.totalorder %s101, %s104
      %p113 = scmp.eq.s32.totalorder %s23, 1
      %p114 = por %p112, %p113
      %p115 = scmp.ne.s32.totalorder %s104, %s105
      %p116 = scmp.eq.s32.totalorder %s23, 0
      %p117 = por %p115, %p116
      %p118 = scmp.ne.s32.totalorder %s104, %s105
      %p119 = scmp.eq.s32.totalorder %s24, 1
      %p120 = por %p118, %p119
      %p122 = scmp.ne.s32.totalorder %s105, %s121
      %p123 = scmp.eq.s32.totalorder %s24, 0
      %p124 = por %p122, %p123
      %s126 = sadd.s32 %s125, 1
      %p129 = scmp.eq.s32.totalorder %s18, 1
      %p130 = scmp.ne.s32.totalorder %s125, %s127
      %p131 = scmp.eq.s32.totalorder %s18, 0
      %p132 = por %p130, %p131
      %p133 = scmp.ne.s32.totalorder %s125, %s127
      %p134 = scmp.eq.s32.totalorder %s23, 1
      %p135 = por %p133, %p134
      %p136 = scmp.ne.s32.totalorder %s127, %s128
      %p137 = scmp.eq.s32.totalorder %s23, 0
      %p138 = por %p136, %p137
      %p139 = scmp.ne.s32.totalorder %s127, %s128
      %p140 = scmp.eq.s32.totalorder %s24, 1
      %p141 = por %p139, %p140
      %p143 = scmp.ne.s32.totalorder %s128, %s142
      %p144 = scmp.eq.s32.totalorder %s24, 0
      %p145 = por %p143, %p144
      %s147 = sadd.s32 %s146, 1
      %p150 = scmp.eq.s32.totalorder %s18, 1
      %p151 = scmp.ne.s32.totalorder %s146, %s148
      %p152 = scmp.eq.s32.totalorder %s18, 0
      %p153 = por %p151, %p152
      %p154 = scmp.ne.s32.totalorder %s146, %s148
      %p155 = scmp.eq.s32.totalorder %s23, 1
      %p156 = por %p154, %p155
      %p157 = scmp.ne.s32.totalorder %s148, %s149
      %p158 = scmp.eq.s32.totalorder %s23, 0
      %p159 = por %p157, %p158
      %p160 = scmp.ne.s32.totalorder %s148, %s149
      %p161 = scmp.eq.s32.totalorder %s24, 1
      %p162 = por %p160, %p161
      %p164 = scmp.ne.s32.totalorder %s149, %s163
      %p165 = scmp.eq.s32.totalorder %s24, 0
      %p166 = por %p164, %p165
      %s168 = sadd.s32 %s167, 1
      %p171 = scmp.eq.s32.totalorder %s18, 1
      %p172 = scmp.ne.s32.totalorder %s167, %s169
      %p173 = scmp.eq.s32.totalorder %s18, 0
      %p174 = por %p172, %p173
      %p175 = scmp.ne.s32.totalorder %s167, %s169
      %p176 = scmp.eq.s32.totalorder %s23, 1
      %p177 = por %p175, %p176
      %p178 = scmp.ne.s32.totalorder %s169, %s170
      %p179 = scmp.eq.s32.totalorder %s23, 0
      %p180 = por %p178, %p179
      %p181 = scmp.ne.s32.totalorder %s169, %s170
      %p182 = scmp.eq.s32.totalorder %s24, 1
      %p183 = por %p181, %p182
      %p185 = scmp.ne.s32.totalorder %s170, %s184
      %p186 = scmp.eq.s32.totalorder %s24, 0
      %p187 = por %p185, %p186
      %s189 = sadd.s32 %s188, 1
      %p192 = scmp.eq.s32.totalorder %s18, 1
      %p193 = scmp.ne.s32.totalorder %s188, %s190
      %p194 = scmp.eq.s32.totalorder %s18, 0
      %p195 = por %p193, %p194
      %p196 = scmp.ne.s32.totalorder %s188, %s190
      %p197 = scmp.eq.s32.totalorder %s23, 1
      %p198 = por %p196, %p197
      %p199 = scmp.ne.s32.totalorder %s190, %s191
      %p200 = scmp.eq.s32.totalorder %s23, 0
      %p201 = por %p199, %p200
      %p202 = scmp.ne.s32.totalorder %s190, %s191
      %p203 = scmp.eq.s32.totalorder %s24, 1
      %p204 = por %p202, %p203
      %p206 = scmp.ne.s32.totalorder %s191, %s205
      %p207 = scmp.eq.s32.totalorder %s24, 0
      %p208 = por %p206, %p207
      %s209 = ssub.s32 %s18, %s25
      %p210 = scmp.eq.s32.totalorder %s209, 0
      %s212 = sadd.s32 %s211, 1
      %s213 = scalar_select %p210, %s211, %s212
      %p216 = pneg %p210
      %p217 = scmp.eq.s32.totalorder %s18, 1
      %p218 = por %p216, %p217
      %p219 = scmp.ne.s32.totalorder %s211, %s214
      %p220 = scmp.eq.s32.totalorder %s18, 0
      %p221 = por %p219, %p220
      %p222 = scmp.ne.s32.totalorder %s211, %s214
      %p223 = scmp.eq.s32.totalorder %s23, 1
      %p224 = por %p222, %p223
      %p225 = scmp.ne.s32.totalorder %s214, %s215
      %p226 = scmp.eq.s32.totalorder %s23, 0
      %p227 = por %p225, %p226
      %p228 = scmp.ne.s32.totalorder %s214, %s215
      %p229 = scmp.eq.s32.totalorder %s24, 1
      %p230 = por %p228, %p229
      %p232 = scmp.ne.s32.totalorder %s215, %s231
      %p233 = scmp.eq.s32.totalorder %s24, 0
      %p234 = por %p232, %p233
      %p235 = scmp.le.s32.totalorder 1, %s18
      %p236 = scmp.lt.s32.totalorder %s18, 3
      %p237 = pnand %p235, %p236
      %p238 = pneg %p237
      // Predicated region
      $region9: #{cnn_forward.7} parent=5 // pred_check
        _
      $region10: #{cnn_forward.7} parent=5 // pred_check_branch
        %240 = sbr.rel (%p237) target = $region12
      $region11: #{cnn_forward.7} parent=5 // pred_region
        %s241 = ssub.s32 %s18, 1
        // Predicated region
        $region13: #{cnn_forward.7} parent=11 // pred_check
          %p242 = pneg %p39
        $region14: #{cnn_forward.7} parent=11 // pred_check_branch
          %244 = sbr.rel (%p242) target = $region16
        $region15: #{cnn_forward.7} parent=11 // pred_region
          %s246 = ssub.s32 16, 16
          %247 = vsyncadd [#allocation4], %s246
          %s249 = sshll.u32 %s0, 4
          %s250 = int_to_ptr.vmem [resolvable:$true] %s249
          %252 = dma.vmem_to_smem %s250, 16, [#allocation2], [#allocation4]
        $region16: #{cnn_forward.7} parent=11 // pred_fallthru
          _
        // Predicated region
        $region17: #{cnn_forward.7} parent=11 // pred_check
          %p253 = pneg %p138
        $region18: #{cnn_forward.7} parent=11 // pred_check_branch
          %255 = sbr.rel (%p253) target = $region20
        $region19: #{cnn_forward.7} parent=11 // pred_region
          _
        $region20: #{cnn_forward.7} parent=11 // pred_fallthru
          _
        // Predicated region
        $region21: #{cnn_forward.7} parent=11 // pred_check
          %p256 = pneg %p159
        $region22: #{cnn_forward.7} parent=11 // pred_check_branch
          %258 = sbr.rel (%p256) target = $region24
        $region23: #{cnn_forward.7} parent=11 // pred_region
          _
        $region24: #{cnn_forward.7} parent=11 // pred_fallthru
          _
        // Predicated region
        $region25: #{cnn_forward.7} parent=11 // pred_check
          %p259 = pneg %p180
        $region26: #{cnn_forward.7} parent=11 // pred_check_branch
          %261 = sbr.rel (%p259) target = $region28
        $region27: #{cnn_forward.7} parent=11 // pred_region
          _
        $region28: #{cnn_forward.7} parent=11 // pred_fallthru
          _
        // Predicated region
        $region29: #{cnn_forward.7} parent=11 // pred_check
          %p262 = pneg %p201
        $region30: #{cnn_forward.7} parent=11 // pred_check_branch
          %264 = sbr.rel (%p262) target = $region32
        $region31: #{cnn_forward.7} parent=11 // pred_region
          _
        $region32: #{cnn_forward.7} parent=11 // pred_fallthru
          _
      $region12: #{cnn_forward.7} parent=5 // pred_fallthru
        _
      %p265 = scmp.lt.s32.totalorder %s18, 2
      // Predicated region
      $region33: #{cnn_forward.7} parent=5 // pred_check
        %p266 = pneg %p265
      $region34: #{cnn_forward.7} parent=5 // pred_check_branch
        %268 = sbr.rel (%p266) target = $region36
      $region35: #{cnn_forward.7} parent=5 // pred_region
        // Predicated region
        $region37: #{cnn_forward.7} parent=35 // pred_check
          %p269 = pneg %p59
        $region38: #{cnn_forward.7} parent=35 // pred_check_branch
          %271 = sbr.rel (%p269) target = $region40
        $region39: #{cnn_forward.7} parent=35 // pred_region
          %p272 = scmp.lt.s32.totalorder %s18, 1
          %s273 = scalar_select %p272, %s18, 1
          %s274 = smul.addr %s273, 8
          %s275 = smul.addr %s274, 8
          %s276 = scalar_lea.vmem %s1, %s275
        $region40: #{cnn_forward.7} parent=35 // pred_fallthru
          _
        // Predicated region
        $region41: #{cnn_forward.7} parent=35 // pred_check
          %p277 = pneg %p85
        $region42: #{cnn_forward.7} parent=35 // pred_check_branch
          %279 = sbr.rel (%p277) target = $region44
        $region43: #{cnn_forward.7} parent=35 // pred_region
          %p280 = scmp.lt.s32.totalorder %s18, 1
          %s281 = scalar_select %p280, %s18, 1
          %s282 = smul.addr %s281, 2
          %s283 = smul.addr %s282, 8
          %s284 = scalar_lea.vmem %s2, %s283
        $region44: #{cnn_forward.7} parent=35 // pred_fallthru
          _
        // Predicated region
        $region45: #{cnn_forward.7} parent=35 // pred_check
          %p285 = pneg %p111
        $region46: #{cnn_forward.7} parent=35 // pred_check_branch
          %287 = sbr.rel (%p285) target = $region48
        $region47: #{cnn_forward.7} parent=35 // pred_region
          %p288 = scmp.lt.s32.totalorder %s18, 1
          %s289 = scalar_select %p288, %s18, 1
          %s290 = smul.addr %s289, 4
          %s291 = scalar_lea.vmem %s3, %s290
        $region48: #{cnn_forward.7} parent=35 // pred_fallthru
          _
      $region36: #{cnn_forward.7} parent=5 // pred_fallthru
        _
      %p292 = scmp.le.s32.totalorder 1, %s18
      %p293 = scmp.lt.s32.totalorder %s18, 3
      %p294 = pnand %p292, %p293
      %p295 = pneg %p294
      // Predicated region
      $region49: #{cnn_forward.7} parent=5 // pred_check
        _
      $region50: #{cnn_forward.7} parent=5 // pred_check_branch
        %297 = sbr.rel (%p294) target = $region52
      $region51: #{cnn_forward.7} parent=5 // pred_region
        %s298 = ssub.s32 %s18, 1
        // Predicated region
        $region53: #{cnn_forward.7} parent=51 // pred_check
          %p299 = pneg %p39
        $region54: #{cnn_forward.7} parent=51 // pred_check_branch
          %301 = sbr.rel (%p299) target = $region56
        $region55: #{cnn_forward.7} parent=51 // pred_region
          %302 = dma.done [#allocation4], 16
        $region56: #{cnn_forward.7} parent=51 // pred_fallthru
          _
        %303 = sfence
        %p304 = pneg %p39
        %p305 = pneg %p36
        %p306 = scmp.lt.s32.totalorder %s23, 1
        %s307 = scalar_select %p306, %s23, 1
        %s308 = smul.addr %s307, 8
        %s309 = smul.addr %s308, 8
        %s310 = scalar_lea.vmem %s1, %s309
        %p311 = pneg %p65
        %p312 = pneg %p62
        %p313 = scmp.lt.s32.totalorder %s23, 1
        %s314 = scalar_select %p313, %s23, 1
        %s315 = smul.addr %s314, 2
        %s316 = smul.addr %s315, 8
        %s317 = scalar_lea.vmem %s2, %s316
        %p318 = pneg %p91
        %p319 = pneg %p88
        %p320 = scmp.lt.s32.totalorder %s23, 1
        %s321 = scalar_select %p320, %s23, 1
        %s322 = smul.addr %s321, 4
        %s323 = scalar_lea.vmem %s3, %s322
        %p324 = pneg %p117
        %p325 = pneg %p114
        %p326 = pneg %p138
        %p327 = pneg %p135
        %p328 = pneg %p159
        %p329 = pneg %p156
        %p330 = pneg %p180
        %p331 = pneg %p177
        %p332 = pneg %p201
        %p333 = pneg %p198
        %p334 = pneg %p227
        %p335 = pneg %p224
        %s336 = sand.u32 %s214, 1
        %s337 = scalar_lea.sflag [#allocation3], %s336
        %s338 = sand.u32 %s214, 1
        %s339 = scalar_lea.vmem [#allocation5], %s338
        %p340 = scmp.lt.s32.totalorder %s23, 1
        %s341 = scalar_select %p340, %s23, 1
        %s342 = smul.addr %s341, 8
        %s343 = smul.addr %s342, 8
        %s344 = scalar_lea.vmem %s1, %s343
        %p345 = scmp.lt.s32.totalorder %s23, 1
        %s346 = scalar_select %p345, %s23, 1
        %s347 = smul.addr %s346, 2
        %s348 = smul.addr %s347, 8
        %s349 = scalar_lea.vmem %s2, %s348
        %p350 = scmp.lt.s32.totalorder %s23, 1
        %s351 = scalar_select %p350, %s23, 1
        %s352 = smul.addr %s351, 4
        %s353 = scalar_lea.vmem %s3, %s352
        %v354 = vld [vmem:[%s7] sm:$0x1]
        %s355 = sld [smem:[#allocation2]]
        %v356 = vld [vmem:[%s344] sm:$0xff]
        %v357 = vld [vmem:[%s344 + $0x8] sm:$0xff]
        %v358 = vld [vmem:[%s344 + $0x10] sm:$0xff]
        %v359 = vld [vmem:[%s344 + $0x18] sm:$0xff]
        %v360 = vld [vmem:[%s344 + $0x20] sm:$0xff]
        %v361 = vld [vmem:[%s344 + $0x28] sm:$0xff]
        %v362 = vld [vmem:[%s344 + $0x30] sm:$0xff]
        %v363 = vld [vmem:[%s344 + $0x38] sm:$0xff]
        %v364 = vmax.f32 %v356, 1e-06
        %v365 = vmax.f32 %v357, 1e-06
        %v366 = vmax.f32 %v358, 1e-06
        %v367 = vmax.f32 %v359, 1e-06
        %v368 = vmax.f32 %v360, 1e-06
        %v369 = vmax.f32 %v361, 1e-06
        %v370 = vmax.f32 %v362, 1e-06
        %v371 = vmax.f32 %v363, 1e-06
        %v372 = vlog2.pop %v364
        %v373 = vmul.f32 %v372, 0.6931472
        %v374 = vlog2.pop %v365
        %v375 = vmul.f32 %v374, 0.6931472
        %v376 = vlog2.pop %v366
        %v377 = vmul.f32 %v376, 0.6931472
        %v378 = vlog2.pop %v367
        %v379 = vmul.f32 %v378, 0.6931472
        %v380 = vlog2.pop %v368
        %v381 = vmul.f32 %v380, 0.6931472
        %v382 = vlog2.pop %v369
        %v383 = vmul.f32 %v382, 0.6931472
        %v384 = vlog2.pop %v370
        %v385 = vmul.f32 %v384, 0.6931472
        %v386 = vlog2.pop %v371
        %v387 = vmul.f32 %v386, 0.6931472
        %v388 = vstv %s355
        %v389 = vmul.f32 %v373, %v388
        %v390 = vmul.f32 %v375, %v388
        %v391 = vmul.f32 %v377, %v388
        %v392 = vmul.f32 %v379, %v388
        %v393 = vmul.f32 %v381, %v388
        %v394 = vmul.f32 %v383, %v388
        %v395 = vmul.f32 %v385, %v388
        %v396 = vmul.f32 %v387, %v388
        %v397 = vmul.f32 %v389, 1.442695
        %v398 = vpow.pop %v397
        %v399 = vmul.f32 %v390, 1.442695
        %v400 = vpow.pop %v399
        %v401 = vmul.f32 %v391, 1.442695
        %v402 = vpow.pop %v401
        %v403 = vmul.f32 %v392, 1.442695
        %v404 = vpow.pop %v403
        %v405 = vmul.f32 %v393, 1.442695
        %v406 = vpow.pop %v405
        %v407 = vmul.f32 %v394, 1.442695
        %v408 = vpow.pop %v407
        %v409 = vmul.f32 %v395, 1.442695
        %v410 = vpow.pop %v409
        %v411 = vmul.f32 %v396, 1.442695
        %v412 = vpow.pop %v411
        %vm413 = vcmask 64512
        %v414 = vsel %vm413, %v398, 0.0
        %v415 = vsel %vm413, %v400, 0.0
        %v416 = vadd.f32 %v414, %v415
        %v417 = vsel %vm413, %v402, 0.0
        %v418 = vadd.f32 %v416, %v417
        %v419 = vsel %vm413, %v404, 0.0
        %v420 = vadd.f32 %v418, %v419
        %v421 = vsel %vm413, %v406, 0.0
        %v422 = vadd.f32 %v420, %v421
        %v423 = vsel %vm413, %v408, 0.0
        %v424 = vadd.f32 %v422, %v423
        %v425 = vsel %vm413, %v410, 0.0
        %v426 = vadd.f32 %v424, %v425
        %v427 = vsel %vm413, %v412, 0.0
        %v428 = vadd.f32 %v426, %v427
        %v429 = vrot.slane %v428, 4
        %v430 = vadd.f32 %v428, %v429
        %v431 = vrot.slane %v430, 2
        %v432 = vadd.f32 %v430, %v431
        %v433 = vrot.slane %v432, 1
        %v434 = vadd.f32 %v432, %v433
        %v435 = vrcp.pop 64.0
        %v436 = vmul.f32 %v434, %v435
        %v437 = vlog2.pop %v436
        %v438 = vmul.f32 %v437, 0.6931472
        %v439 = vstv %s355
        %v440 = vrcp.pop %v439
        %s441 = vtos %v440
        %v442 = vstv %s441
        %v443 = vmul.f32 %v438, %v442
        %v444 = vmul.f32 %v443, 1.442695
        %v445 = vpow.pop %v444
        %v446 = vld [vmem:[%s4] sm:$0xff]
        %v448 = vsel %vm413, %v445, 0
        %450 = vmatprep.subr.mxu0 0.0
        %451 = vmatpush1.msra.mxu0 %v446
        %452 = vmatprep.subr.mxu0 0.0
        %453 = vmatpush1.msra.mxu0 0.0
        %454 = vmatprep.subr.mxu0 0.0
        %455 = vmatpush1.msra.mxu0 0.0
        %456 = vmatprep.subr.mxu0 0.0
        %457 = vmatpush1.msra.mxu0 0.0
        %458 = vmatprep.subr.mxu0 0.0
        %459 = vmatpush1.msra.mxu0 0.0
        %460 = vmatprep.subr.mxu0 0.0
        %461 = vmatpush1.msra.mxu0 0.0
        %462 = vmatprep.subr.mxu0 0.0
        %463 = vmatpush1.msra.mxu0 0.0
        %464 = vmatprep.subr.mxu0 0.0
        %465 = vmatpush1.msra.mxu0 0.0
        %466 = vmatprep.subr.mxu0 0.0
        %467 = vmatpush1.msra.mxu0 0.0
        %468 = vmatprep.subr.mxu0 0.0
        %469 = vmatpush1.msra.mxu0 0.0
        %470 = vmatprep.subr.mxu0 0.0
        %471 = vmatpush1.msra.mxu0 0.0
        %472 = vmatprep.subr.mxu0 0.0
        %473 = vmatpush1.msra.mxu0 0.0
        %474 = vmatprep.subr.mxu0 0.0
        %475 = vmatpush1.msra.mxu0 0.0
        %476 = vmatprep.subr.mxu0 0.0
        %477 = vmatpush1.msra.mxu0 0.0
        %478 = vmatprep.subr.mxu0 0.0
        %479 = vmatpush1.msra.mxu0 0.0
        %480 = vmatprep.subr.mxu0 0.0
        %481 = vmatpush1.msra.mxu0 0.0
        %482 = vmatprep.subr.mxu0 0.0
        %483 = vmatpush1.msra.mxu0 0.0
        %484 = vmatprep.subr.mxu0 0.0
        %485 = vmatpush1.msra.mxu0 0.0
        %486 = vmatprep.subr.mxu0 0.0
        %487 = vmatpush1.msra.mxu0 0.0
        %488 = vmatprep.subr.mxu0 0.0
        %489 = vmatpush1.msra.mxu0 0.0
        %490 = vmatprep.subr.mxu0 0.0
        %491 = vmatpush1.msra.mxu0 0.0
        %492 = vmatprep.subr.mxu0 0.0
        %493 = vmatpush1.msra.mxu0 0.0
        %494 = vmatprep.subr.mxu0 0.0
        %495 = vmatpush1.msra.mxu0 0.0
        %496 = vmatprep.subr.mxu0 0.0
        %497 = vmatpush1.msra.mxu0 0.0
        %498 = vmatprep.subr.mxu0 0.0
        %499 = vmatpush1.msra.mxu0 0.0
        %500 = vmatprep.subr.mxu0 0.0
        %501 = vmatpush1.msra.mxu0 0.0
        %502 = vmatprep.subr.mxu0 0.0
        %503 = vmatpush1.msra.mxu0 0.0
        %504 = vmatprep.subr.mxu0 0.0
        %505 = vmatpush1.msra.mxu0 0.0
        %506 = vmatprep.subr.mxu0 0.0
        %507 = vmatpush1.msra.mxu0 0.0
        %508 = vmatprep.subr.mxu0 0.0
        %509 = vmatpush1.msra.mxu0 0.0
        %510 = vmatprep.subr.mxu0 0.0
        %511 = vmatpush1.msra.mxu0 0.0
        %512 = vmatprep.subr.mxu0 0.0
        %513 = vmatpush1.msra.mxu0 0.0
        %514 = vmatprep.mubr.f32.mxu0 0.0
        %515 = vmatmul.mubr.f32.gmra.mrb[0].mxu0 %v448
        %v516 = vpop.f32.mrb[0].mxu0
        %v517 = vadd.f32 0.0, %v516
        %v518 = vpop.f32.mrb[0].mxu0
        %519 = vdwg.mxu0
        %v520 = vadd.f32 %v354, %v517
        %s521 = sld [smem:[#allocation2 + $0x1]]
        %v522 = vld [vmem:[%s349] sm:$0xff]
        %v523 = vld [vmem:[%s349 + $0x8] sm:$0xff]
        %v524 = vmax.f32 %v522, 1e-06
        %v525 = vmax.f32 %v523, 1e-06
        %v526 = vlog2.pop %v524
        %v527 = vmul.f32 %v526, 0.6931472
        %v528 = vlog2.pop %v525
        %v529 = vmul.f32 %v528, 0.6931472
        %v530 = vstv %s521
        %v531 = vmul.f32 %v527, %v530
        %v532 = vmul.f32 %v529, %v530
        %v533 = vmul.f32 %v531, 1.442695
        %v534 = vpow.pop %v533
        %v535 = vmul.f32 %v532, 1.442695
        %v536 = vpow.pop %v535
        %vm537 = vcmask 130048
        %v538 = vsel %vm537, %v534, 0.0
        %v539 = vsel %vm537, %v536, 0.0
        %v540 = vadd.f32 %v538, %v539
        %v541 = vrot.slane %v540, 4
        %v542 = vadd.f32 %v540, %v541
        %v543 = vrot.slane %v542, 2
        %v544 = vadd.f32 %v542, %v543
        %v545 = vrot.slane %v544, 1
        %v546 = vadd.f32 %v544, %v545
        %v547 = vrcp.pop 16.0
        %v548 = vmul.f32 %v546, %v547
        %v549 = vlog2.pop %v548
        %v550 = vmul.f32 %v549, 0.6931472
        %v551 = vstv %s521
        %v552 = vrcp.pop %v551
        %s553 = vtos %v552
        %v554 = vstv %s553
        %v555 = vmul.f32 %v550, %v554
        %v556 = vmul.f32 %v555, 1.442695
        %v557 = vpow.pop %v556
        %v558 = vld [vmem:[%s5] sm:$0xff]
        %v559 = vld [vmem:[%s5 + $0x8] sm:$0xff]
        %v561 = vsel %vm537, %v557, 0
        %563 = vmatprep.subr.mxu0 0.0
        %564 = vmatpush1.msra.mxu0 %v558
        %565 = vmatprep.subr.mxu0 0.0
        %566 = vmatpush1.msra.mxu0 %v559
        %567 = vmatprep.subr.mxu0 0.0
        %568 = vmatpush1.msra.mxu0 0.0
        %569 = vmatprep.subr.mxu0 0.0
        %570 = vmatpush1.msra.mxu0 0.0
        %571 = vmatprep.subr.mxu0 0.0
        %572 = vmatpush1.msra.mxu0 0.0
        %573 = vmatprep.subr.mxu0 0.0
        %574 = vmatpush1.msra.mxu0 0.0
        %575 = vmatprep.subr.mxu0 0.0
        %576 = vmatpush1.msra.mxu0 0.0
        %577 = vmatprep.subr.mxu0 0.0
        %578 = vmatpush1.msra.mxu0 0.0
        %579 = vmatprep.subr.mxu0 0.0
        %580 = vmatpush1.msra.mxu0 0.0
        %581 = vmatprep.subr.mxu0 0.0
        %582 = vmatpush1.msra.mxu0 0.0
        %583 = vmatprep.subr.mxu0 0.0
        %584 = vmatpush1.msra.mxu0 0.0
        %585 = vmatprep.subr.mxu0 0.0
        %586 = vmatpush1.msra.mxu0 0.0
        %587 = vmatprep.subr.mxu0 0.0
        %588 = vmatpush1.msra.mxu0 0.0
        %589 = vmatprep.subr.mxu0 0.0
        %590 = vmatpush1.msra.mxu0 0.0
        %591 = vmatprep.subr.mxu0 0.0
        %592 = vmatpush1.msra.mxu0 0.0
        %593 = vmatprep.subr.mxu0 0.0
        %594 = vmatpush1.msra.mxu0 0.0
        %595 = vmatprep.subr.mxu0 0.0
        %596 = vmatpush1.msra.mxu0 0.0
        %597 = vmatprep.subr.mxu0 0.0
        %598 = vmatpush1.msra.mxu0 0.0
        %599 = vmatprep.subr.mxu0 0.0
        %600 = vmatpush1.msra.mxu0 0.0
        %601 = vmatprep.subr.mxu0 0.0
        %602 = vmatpush1.msra.mxu0 0.0
        %603 = vmatprep.subr.mxu0 0.0
        %604 = vmatpush1.msra.mxu0 0.0
        %605 = vmatprep.subr.mxu0 0.0
        %606 = vmatpush1.msra.mxu0 0.0
        %607 = vmatprep.subr.mxu0 0.0
        %608 = vmatpush1.msra.mxu0 0.0
        %609 = vmatprep.subr.mxu0 0.0
        %610 = vmatpush1.msra.mxu0 0.0
        %611 = vmatprep.subr.mxu0 0.0
        %612 = vmatpush1.msra.mxu0 0.0
        %613 = vmatprep.subr.mxu0 0.0
        %614 = vmatpush1.msra.mxu0 0.0
        %615 = vmatprep.subr.mxu0 0.0
        %616 = vmatpush1.msra.mxu0 0.0
        %617 = vmatprep.subr.mxu0 0.0
        %618 = vmatpush1.msra.mxu0 0.0
        %619 = vmatprep.subr.mxu0 0.0
        %620 = vmatpush1.msra.mxu0 0.0
        %621 = vmatprep.subr.mxu0 0.0
        %622 = vmatpush1.msra.mxu0 0.0
        %623 = vmatprep.subr.mxu0 0.0
        %624 = vmatpush1.msra.mxu0 0.0
        %625 = vmatprep.subr.mxu0 0.0
        %626 = vmatpush1.msra.mxu0 0.0
        %627 = vmatprep.mubr.f32.mxu0 0.0
        %628 = vmatmul.mubr.f32.gmra.mrb[0].mxu0 %v561
        %v629 = vpop.f32.mrb[0].mxu0
        %v630 = vadd.f32 0.0, %v629
        %v631 = vpop.f32.mrb[0].mxu0
        %632 = vdwg.mxu0
        %v633 = vadd.f32 %v520, %v630
        %s634 = sld [smem:[#allocation2 + $0x2]]
        %v635 = vld [vmem:[%s353] sm:$0xf]
        %v636 = vmax.f32 %v635, 1e-06
        %v637 = vlog2.pop %v636
        %v638 = vmul.f32 %v637, 0.6931472
        %v639 = vstv %s634
        %v640 = vmul.f32 %v638, %v639
        %v641 = vmul.f32 %v640, 1.442695
        %v642 = vpow.pop %v641
        %vm643 = vcmask 257024
        %v644 = vsel %vm643, %v642, 0.0
        %v645 = vrot.slane %v644, 4
        %v646 = vadd.f32 %v644, %v645
        %v647 = vrot.slane %v646, 2
        %v648 = vadd.f32 %v646, %v647
        %v649 = vrot.slane %v648, 1
        %v650 = vadd.f32 %v648, %v649
        %v651 = vrcp.pop 4.0
        %v652 = vmul.f32 %v650, %v651
        %v653 = vlog2.pop %v652
        %v654 = vmul.f32 %v653, 0.6931472
        %v655 = vstv %s634
        %v656 = vrcp.pop %v655
        %s657 = vtos %v656
        %v658 = vstv %s657
        %v659 = vmul.f32 %v654, %v658
        %v660 = vmul.f32 %v659, 1.442695
        %v661 = vpow.pop %v660
        %v662 = vld [vmem:[%s6] sm:$0xff]
        %v663 = vld [vmem:[%s6 + $0x8] sm:$0xff]
        %v664 = vld [vmem:[%s6 + $0x10] sm:$0xff]
        %v665 = vld [vmem:[%s6 + $0x18] sm:$0xff]
        %vm666 = vcmask 261120
        %v668 = vsel %vm666, %v661, 0
        %670 = vmatprep.subr.mxu0 0.0
        %671 = vmatpush1.msra.mxu0 %v662
        %672 = vmatprep.subr.mxu0 0.0
        %673 = vmatpush1.msra.mxu0 %v663
        %674 = vmatprep.subr.mxu0 0.0
        %675 = vmatpush1.msra.mxu0 %v664
        %676 = vmatprep.subr.mxu0 0.0
        %677 = vmatpush1.msra.mxu0 %v665
        %678 = vmatprep.subr.mxu0 0.0
        %679 = vmatpush1.msra.mxu0 0.0
        %680 = vmatprep.subr.mxu0 0.0
        %681 = vmatpush1.msra.mxu0 0.0
        %682 = vmatprep.subr.mxu0 0.0
        %683 = vmatpush1.msra.mxu0 0.0
        %684 = vmatprep.subr.mxu0 0.0
        %685 = vmatpush1.msra.mxu0 0.0
        %686 = vmatprep.subr.mxu0 0.0
        %687 = vmatpush1.msra.mxu0 0.0
        %688 = vmatprep.subr.mxu0 0.0
        %689 = vmatpush1.msra.mxu0 0.0
        %690 = vmatprep.subr.mxu0 0.0
        %691 = vmatpush1.msra.mxu0 0.0
        %692 = vmatprep.subr.mxu0 0.0
        %693 = vmatpush1.msra.mxu0 0.0
        %694 = vmatprep.subr.mxu0 0.0
        %695 = vmatpush1.msra.mxu0 0.0
        %696 = vmatprep.subr.mxu0 0.0
        %697 = vmatpush1.msra.mxu0 0.0
        %698 = vmatprep.subr.mxu0 0.0
        %699 = vmatpush1.msra.mxu0 0.0
        %700 = vmatprep.subr.mxu0 0.0
        %701 = vmatpush1.msra.mxu0 0.0
        %702 = vmatprep.subr.mxu0 0.0
        %703 = vmatpush1.msra.mxu0 0.0
        %704 = vmatprep.subr.mxu0 0.0
        %705 = vmatpush1.msra.mxu0 0.0
        %706 = vmatprep.subr.mxu0 0.0
        %707 = vmatpush1.msra.mxu0 0.0
        %708 = vmatprep.subr.mxu0 0.0
        %709 = vmatpush1.msra.mxu0 0.0
        %710 = vmatprep.subr.mxu0 0.0
        %711 = vmatpush1.msra.mxu0 0.0
        %712 = vmatprep.subr.mxu0 0.0
        %713 = vmatpush1.msra.mxu0 0.0
        %714 = vmatprep.subr.mxu0 0.0
        %715 = vmatpush1.msra.mxu0 0.0
        %716 = vmatprep.subr.mxu0 0.0
        %717 = vmatpush1.msra.mxu0 0.0
        %718 = vmatprep.subr.mxu0 0.0
        %719 = vmatpush1.msra.mxu0 0.0
        %720 = vmatprep.subr.mxu0 0.0
        %721 = vmatpush1.msra.mxu0 0.0
        %722 = vmatprep.subr.mxu0 0.0
        %723 = vmatpush1.msra.mxu0 0.0
        %724 = vmatprep.subr.mxu0 0.0
        %725 = vmatpush1.msra.mxu0 0.0
        %726 = vmatprep.subr.mxu0 0.0
        %727 = vmatpush1.msra.mxu0 0.0
        %728 = vmatprep.subr.mxu0 0.0
        %729 = vmatpush1.msra.mxu0 0.0
        %730 = vmatprep.subr.mxu0 0.0
        %731 = vmatpush1.msra.mxu0 0.0
        %732 = vmatprep.subr.mxu0 0.0
        %733 = vmatpush1.msra.mxu0 0.0
        %734 = vmatprep.mubr.f32.mxu0 0.0
        %735 = vmatmul.mubr.f32.gmra.mrb[0].mxu0 %v668
        %v736 = vpop.f32.mrb[0].mxu0
        %v737 = vadd.f32 0.0, %v736
        %v738 = vpop.f32.mrb[0].mxu0
        %739 = vdwg.mxu0
        %v740 = vadd.f32 %v633, %v737
        %vm741 = vcmask 49152
        %742 = vst.msk [vmem:[%s339] sm:$0x1] %vm741, %v740
        %s743 = sand.u32 %s214, 1
        %s744 = scalar_lea.sflag [#allocation3], %s743
        %s745 = sand.u32 %s214, 1
        %s746 = scalar_lea.vmem [#allocation5], %s745
        // Predicated region
        $region57: #{cnn_forward.7} parent=51 // pred_check
          %p747 = pneg %p224
        $region58: #{cnn_forward.7} parent=51 // pred_check_branch
          %749 = sbr.rel (%p747) target = $region60
        $region59: #{cnn_forward.7} parent=51 // pred_region
          %s751 = ssub.s32 16, 16
          %752 = vsyncadd %s744, %s751
          %s753 = smul.addr %s23, 16
          %s754 = scalar_lea.hbm %s8, %s753
          %s756 = sshll.u32 %s746, 4
          %s757 = int_to_ptr.vmem [resolvable:$true] %s756
          %759 = dma.vmem_to_hbm [thread:$0]  %s757, 16, %s754, %s744
        $region60: #{cnn_forward.7} parent=51 // pred_fallthru
          _
      $region52: #{cnn_forward.7} parent=5 // pred_fallthru
        _
      %p760 = scmp.le.s32.totalorder 2, %s18
      // Predicated region
      $region61: #{cnn_forward.7} parent=5 // pred_check
        %p761 = pneg %p760
      $region62: #{cnn_forward.7} parent=5 // pred_check_branch
        %763 = sbr.rel (%p761) target = $region64
      $region63: #{cnn_forward.7} parent=5 // pred_region
        %s764 = ssub.s32 %s18, 2
        // Predicated region
        $region65: #{cnn_forward.7} parent=63 // pred_check
          %p765 = pneg %p230
        $region66: #{cnn_forward.7} parent=63 // pred_check_branch
          %767 = sbr.rel (%p765) target = $region68
        $region67: #{cnn_forward.7} parent=63 // pred_region
          %s768 = sand.u32 %s215, 1
          %s769 = scalar_lea.sflag [#allocation3], %s768
          %s770 = sand.u32 %s215, 1
          %s771 = scalar_lea.vmem [#allocation5], %s770
          %772 = dma.done %s769, 16
        $region68: #{cnn_forward.7} parent=63 // pred_fallthru
          _
      $region64: #{cnn_forward.7} parent=5 // pred_fallthru
        _
    $region6: #{cnn_forward.7} parent=1 // loop_footer
      %s22 = sadd.s32 1, %s18
    $region7: #{cnn_forward.7} parent=1 // loop_footer_branch
      %17 = sbr.rel target = $region3
    $region8: #{cnn_forward.7} parent=1 // loop_exit
      _
    %773 = vsyncpa [#allocation3], 1
    %s774 = scalar_lea.sflag [#allocation3], 1
    %775 = vsyncpa %s774, 1
    %776 = vsyncpa [#allocation4], 1
    %s777 = scalar_lea.sflag [#allocation4], 1
    %778 = vsyncpa %s777, 1

</llo_original>
